<compile_context>
chip_gen: v6e
topology: v6e:2x2x1
jax: 0.10.0
libtpu: 0.0.40
codegen_flags: <defaults>
</compile_context>

<pallas_src>
from functools import partial

import jax
import jax.numpy as jnp
from jax import lax
from jax.experimental import pallas as pl
from jax.experimental.pallas import tpu as pltpu


# ----------------------------------------------------------------------------
# Pallas kernel: fused (reg ++ cls) 3x3 conv, stride 1, input pre-padded
# ----------------------------------------------------------------------------
def _fused_conv3x3_kernel(x_ref, w_ref, b_ref, o_ref):
    """One batch element per grid step.

    x_ref: (1, H+2, W+2, Cin)   bf16 zero-padded input tile (VMEM)
    w_ref: (9*Cin, Cout_pad)    bf16 im2col-reshaped fused (reg ++ cls) weight
    b_ref: (1, Cout_pad)        f32 fused bias (zeros in padded columns)
    o_ref: (1, H*W, Cout_pad)   f32 lane-dense output (Cout_pad % 128 == 0)
    """
    Hp2, Wp2, cin = x_ref.shape[1], x_ref.shape[2], x_ref.shape[3]
    H, W = Hp2 - 2, Wp2 - 2

    # Upcast once after the bf16 HBM->VMEM load; all slicing / reshaping / concat
    # (relayout work) happens in f32, and only the matmul operand is cast back to
    # bf16 so the MXU runs at bf16 rate with f32 accumulation.
    x = x_ref[0].astype(jnp.float32)                       # (H+2, W+2, Cin)

    # Build the im2col patch matrix ONCE per grid step (it feeds both the reg and
    # the cls halves of the fused weight).
    cols = []
    for kh in range(3):
        for kw in range(3):
            cols.append(x[kh:kh + H, kw:kw + W, :].reshape(H * W, cin))
    patch = jnp.concatenate(cols, axis=-1).astype(jnp.bfloat16)   # (H*W, 9*Cin)

    # Single MXU matmul for both convolutions of this level.
    acc = jnp.dot(patch, w_ref[...],
                  preferred_element_type=jnp.float32)      # (H*W, Cout_pad) f32

    # Bias add in f32 (safe on v5e: no bf16 VPU), lane-dense store.
    o_ref[0] = (acc + b_ref[...]).astype(o_ref.dtype)


def _fused_conv3x3_pallas(x_pad_nhwc, w_fused, b_fused):
    """x_pad_nhwc: (N, H+2, W+2, Cin) bf16; w_fused: (9*Cin, Cout_pad) bf16;
    b_fused: (1, Cout_pad) f32. Returns (N, H*W, Cout_pad) f32."""
    N, Hp2, Wp2, Cin = x_pad_nhwc.shape
    H, W = Hp2 - 2, Wp2 - 2
    K, Cout_pad = w_fused.shape

    flops = 2 * N * H * W * K * Cout_pad
    bytes_accessed = (x_pad_nhwc.size * x_pad_nhwc.dtype.itemsize
                      + w_fused.size * w_fused.dtype.itemsize
                      + b_fused.size * b_fused.dtype.itemsize
                      + N * H * W * Cout_pad * 4)

    grid_spec = pltpu.PrefetchScalarGridSpec(
        num_scalar_prefetch=0,
        grid=(N,),  # >= 2 parallel programs -> v7x megacore can shard over batch
        in_specs=[
            pl.BlockSpec((1, Hp2, Wp2, Cin), lambda n: (n, 0, 0, 0)),
            pl.BlockSpec((K, Cout_pad), lambda n: (0, 0)),
            pl.BlockSpec((1, Cout_pad), lambda n: (0, 0)),
        ],
        out_specs=pl.BlockSpec((1, H * W, Cout_pad), lambda n: (n, 0, 0)),
    )

    return pl.pallas_call(
        _fused_conv3x3_kernel,
        out_shape=jax.ShapeDtypeStruct((N, H * W, Cout_pad), jnp.float32),
        grid_spec=grid_spec,
        compiler_params=pltpu.CompilerParams(
            dimension_semantics=("parallel",)),
        cost_estimate=pl.CostEstimate(
            flops=flops, transcendentals=0, bytes_accessed=bytes_accessed),
    )(x_pad_nhwc, w_fused, b_fused)


@partial(jax.jit, static_argnames=("reg_out", "cls_out"))
def _m2det_level_forward(feat_nchw, w_fused, b_fused, *, reg_out, cls_out):
    """One feature level: NCHW f32 in -> (cls_score, bbox_pred) NCHW f32 out."""
    N, _, H, W = feat_nchw.shape
    cout_pad = w_fused.shape[-1]
    # transpose + bf16 cast + pad=1 halo fused by XLA into one copy.
    x = jnp.transpose(feat_nchw, (0, 2, 3, 1)).astype(jnp.bfloat16)
    x_pad = jnp.pad(x, ((0, 0), (1, 1), (1, 1), (0, 0)))
    out = _fused_conv3x3_pallas(x_pad, w_fused, b_fused)       # (N, H*W, Cout_pad)
    out = out.reshape(N, H, W, cout_pad)
    bbox = jnp.transpose(out[..., :reg_out], (0, 3, 1, 2))
    cls = jnp.transpose(out[..., reg_out:reg_out + cls_out], (0, 3, 1, 2))
    return cls, bbox


# ----------------------------------------------------------------------------
# M2detHead (forward only)
# ----------------------------------------------------------------------------
class M2detHeadPallas:
    """JAX/Pallas re-implementation of M2detHead.forward.

    Per feature-map level i:
        bbox_pred_i = reg_conv_i(feat_i)   # Conv2d(planes*num_levels -> 4*6,          3x3, pad 1)
        cls_score_i = cls_conv_i(feat_i)   # Conv2d(planes*num_levels -> num_classes*6, 3x3, pad 1)
    The two convs of a level share one fused Pallas kernel.
    Returns (cls_scores, bbox_preds) as lists of NCHW arrays (matching PyTorch).
    """

    def __init__(self, planes, num_levels, num_classes, num_featmaps, key):
        self.num_classes = num_classes
        cin = planes * num_levels
        self.reg_out = 4 * 6
        self.cls_out = num_classes * 6
        cout_fused = self.reg_out + self.cls_out
        self.cout_pad = pl.cdiv(cout_fused, 128) * 128   # lane-dense output channels

        # Unfused HWIO params kept around for the reference check.
        self.reg_weights, self.reg_biases = [], []
        self.cls_weights, self.cls_biases = [], []
        # Fused, im2col-reshaped, lane-padded params consumed by the kernel.
        self.fused_weights, self.fused_biases = [], []

        for _ in range(num_featmaps):
            key, k1, k2, k3, k4 = jax.random.split(key, 5)
            reg_std = (2.0 / (self.reg_out * 9)) ** 0.5
            cls_std = (2.0 / (self.cls_out * 9)) ** 0.5
            reg_w = jax.random.normal(k1, (3, 3, cin, self.reg_out), jnp.float32) * reg_std
            cls_w = jax.random.normal(k2, (3, 3, cin, self.cls_out), jnp.float32) * cls_std
            reg_b = jax.random.normal(k3, (self.reg_out,), jnp.float32) * 0.1
            cls_b = jax.random.normal(k4, (self.cls_out,), jnp.float32) * 0.1
            self.reg_weights.append(reg_w)
            self.reg_biases.append(reg_b)
            self.cls_weights.append(cls_w)
            self.cls_biases.append(cls_b)

            # Host-side fusion: concat reg++cls along Cout, im2col reshape to
            # (9*Cin, Cout), zero-pad Cout to a multiple of 128, cast to bf16.
            w_cat = jnp.concatenate([reg_w, cls_w], axis=-1)        # (3,3,Cin,Cout_fused)
            w_im2col = w_cat.reshape(9 * cin, cout_fused)
            w_pad = jnp.pad(w_im2col, ((0, 0), (0, self.cout_pad - cout_fused)))
            self.fused_weights.append(w_pad.astype(jnp.bfloat16))

            b_cat = jnp.concatenate([reg_b, cls_b])
            b_pad = jnp.pad(b_cat, (0, self.cout_pad - cout_fused)).reshape(1, self.cout_pad)
            self.fused_biases.append(b_pad)   # f32

    def forward(self, feats_nchw):
        cls_scores, bbox_preds = [], []
        for i, feat in enumerate(feats_nchw):
            cls, bbox = _m2det_level_forward(
                feat, self.fused_weights[i], self.fused_biases[i],
                reg_out=self.reg_out, cls_out=self.cls_out)
            cls_scores.append(cls)
            bbox_preds.append(bbox)
        return cls_scores, bbox_preds


# ----------------------------------------------------------------------------
# Reference conv in plain JAX (bf16 operands, f32 accumulation, like the kernel)
# ----------------------------------------------------------------------------
def conv3x3_ref(x_nhwc, weight_hwio, bias):
    out = lax.conv_general_dilated(
        x_nhwc.astype(jnp.bfloat16), weight_hwio.astype(jnp.bfloat16),
        window_strides=(1, 1), padding="SAME",
        dimension_numbers=("NHWC", "HWIO", "NHWC"),
        preferred_element_type=jnp.float32,
    )
    return out + bias[None, None, None, :]


if __name__ == "__main__":
    key = jax.random.PRNGKey(0)

    # Small, module-consistent shapes:
    #   planes=4, num_levels=2  -> Cin = 8
    #   num_classes=5           -> cls channels = 30, reg channels = 24 (fused 54 -> padded 128)
    #   two feature levels: (16,16) and (8,8), batch=2
    planes, num_levels, num_classes = 4, 2, 5
    featmap_sizes = [(16, 16), (8, 8)]
    batch = 2
    cin = planes * num_levels

    key, kh = jax.random.split(key)
    head = M2detHeadPallas(planes, num_levels, num_classes, len(featmap_sizes), kh)

    feats = []
    for (h, w) in featmap_sizes:
        key, kf = jax.random.split(key)
        feats.append(jax.random.normal(kf, (batch, cin, h, w), jnp.float32))  # NCHW

    cls_scores, bbox_preds = head.forward(feats)
    jax.block_until_ready(cls_scores)
    jax.block_until_ready(bbox_preds)

    # Verify against plain-JAX reference conv (same bf16 operands / f32 accumulation).
    ok = True
    for i, feat in enumerate(feats):
        x = jnp.transpose(feat, (0, 2, 3, 1))
        reg_ref = jnp.transpose(
            conv3x3_ref(x, head.reg_weights[i], head.reg_biases[i]), (0, 3, 1, 2))
        cls_ref = jnp.transpose(
            conv3x3_ref(x, head.cls_weights[i], head.cls_biases[i]), (0, 3, 1, 2))
        ok &= bool(jnp.allclose(bbox_preds[i], reg_ref, atol=2e-2, rtol=2e-2))
        ok &= bool(jnp.allclose(cls_scores[i], cls_ref, atol=2e-2, rtol=2e-2))
        # Shape checks mirroring the PyTorch doc: (b, 24, h, w) and (b, num_classes*6, h, w)
        assert bbox_preds[i].shape == (batch, 24, *featmap_sizes[i])
        assert cls_scores[i].shape == (batch, num_classes * 6, *featmap_sizes[i])

    if ok:
        print("KERNEL_OK")
    else:
        print("MISMATCH")
</pallas_src>

<mosaic_0001>
module attributes {stable_mosaic.version = 11 : i64} {
  func.func @_fused_conv3x3_kernel(%arg0: i32, %arg1: memref<1x18x18x8xbf16, #tpu.memory_space<vmem>>, %arg2: memref<72x128xbf16, #tpu.memory_space<vmem>>, %arg3: memref<1x128xf32, #tpu.memory_space<vmem>>, %arg4: memref<1x256x128xf32, #tpu.memory_space<vmem>>) attributes {dimension_semantics = [#tpu.dimension_semantics<parallel>], iteration_bounds = array<i64: 2>, scalar_prefetch = 0 : i64, scratch_operands = 0 : i64, tpu.core_type = #tpu.core_type<tc>, window_params = [{transform_indices = @transform_0, window_bounds = array<i64: 1, 18, 18, 8>}, {pipeline_mode = #tpu.pipeline_mode<synchronous>, transform_indices = @transform_1, window_bounds = array<i64: 72, 128>}, {pipeline_mode = #tpu.pipeline_mode<synchronous>, transform_indices = @transform_2, window_bounds = array<i64: 1, 128>}, {transform_indices = @transform_3, window_bounds = array<i64: 1, 256, 128>}]} {
    %c0 = arith.constant 0 : index
    %c0_0 = arith.constant 0 : index
    %c0_1 = arith.constant 0 : index
    %c0_2 = arith.constant 0 : index
    %0 = vector.load %arg1[%c0, %c0_0, %c0_1, %c0_2] : memref<1x18x18x8xbf16, #tpu.memory_space<vmem>>, vector<1x18x18x8xbf16>
    %1 = vector.shape_cast %0 : vector<1x18x18x8xbf16> to vector<18x18x8xbf16>
    %2 = arith.extf %1 : vector<18x18x8xbf16> to vector<18x18x8xf32>
    %3 = vector.extract_strided_slice %2 {offsets = [0, 0, 0], sizes = [16, 16, 8], strides = [1, 1, 1]} : vector<18x18x8xf32> to vector<16x16x8xf32>
    %4 = vector.shape_cast %3 : vector<16x16x8xf32> to vector<256x8xf32>
    %5 = vector.extract_strided_slice %2 {offsets = [0, 1, 0], sizes = [16, 16, 8], strides = [1, 1, 1]} : vector<18x18x8xf32> to vector<16x16x8xf32>
    %6 = vector.shape_cast %5 : vector<16x16x8xf32> to vector<256x8xf32>
    %7 = vector.extract_strided_slice %2 {offsets = [0, 2, 0], sizes = [16, 16, 8], strides = [1, 1, 1]} : vector<18x18x8xf32> to vector<16x16x8xf32>
    %8 = vector.shape_cast %7 : vector<16x16x8xf32> to vector<256x8xf32>
    %9 = vector.extract_strided_slice %2 {offsets = [1, 0, 0], sizes = [16, 16, 8], strides = [1, 1, 1]} : vector<18x18x8xf32> to vector<16x16x8xf32>
    %10 = vector.shape_cast %9 : vector<16x16x8xf32> to vector<256x8xf32>
    %11 = vector.extract_strided_slice %2 {offsets = [1, 1, 0], sizes = [16, 16, 8], strides = [1, 1, 1]} : vector<18x18x8xf32> to vector<16x16x8xf32>
    %12 = vector.shape_cast %11 : vector<16x16x8xf32> to vector<256x8xf32>
    %13 = vector.extract_strided_slice %2 {offsets = [1, 2, 0], sizes = [16, 16, 8], strides = [1, 1, 1]} : vector<18x18x8xf32> to vector<16x16x8xf32>
    %14 = vector.shape_cast %13 : vector<16x16x8xf32> to vector<256x8xf32>
    %15 = vector.extract_strided_slice %2 {offsets = [2, 0, 0], sizes = [16, 16, 8], strides = [1, 1, 1]} : vector<18x18x8xf32> to vector<16x16x8xf32>
    %16 = vector.shape_cast %15 : vector<16x16x8xf32> to vector<256x8xf32>
    %17 = vector.extract_strided_slice %2 {offsets = [2, 1, 0], sizes = [16, 16, 8], strides = [1, 1, 1]} : vector<18x18x8xf32> to vector<16x16x8xf32>
    %18 = vector.shape_cast %17 : vector<16x16x8xf32> to vector<256x8xf32>
    %19 = vector.extract_strided_slice %2 {offsets = [2, 2, 0], sizes = [16, 16, 8], strides = [1, 1, 1]} : vector<18x18x8xf32> to vector<16x16x8xf32>
    %20 = vector.shape_cast %19 : vector<16x16x8xf32> to vector<256x8xf32>
    %21 = tpu.concatenate %4, %6, %8, %10, %12, %14, %16, %18, %20 in 1 : vector<256x8xf32>, vector<256x8xf32>, vector<256x8xf32>, vector<256x8xf32>, vector<256x8xf32>, vector<256x8xf32>, vector<256x8xf32>, vector<256x8xf32>, vector<256x8xf32> -> vector<256x72xf32>
    %22 = arith.truncf %21 : vector<256x72xf32> to vector<256x72xbf16>
    %c0_3 = arith.constant 0 : index
    %c0_4 = arith.constant 0 : index
    %23 = vector.load %arg2[%c0_3, %c0_4] : memref<72x128xbf16, #tpu.memory_space<vmem>>, vector<72x128xbf16>
    %cst = arith.constant dense<0.000000e+00> : vector<256x128xf32>
    %24 = tpu.matmul %22, %23, %cst {dimension_numbers = #tpu.dot_dimension_numbers<[1], [0], [0], [1], [0, 0, 1, 1], [], []>} : vector<256x72xbf16>, vector<72x128xbf16>, vector<256x128xf32> -> vector<256x128xf32>
    %c0_5 = arith.constant 0 : index
    %c0_6 = arith.constant 0 : index
    %25 = vector.load %arg3[%c0_5, %c0_6] : memref<1x128xf32, #tpu.memory_space<vmem>>, vector<1x128xf32>
    %26 = vector.broadcast %25 : vector<1x128xf32> to vector<256x128xf32>
    %27 = arith.addf %24, %26 : vector<256x128xf32>
    %c0_7 = arith.constant 0 : index
    %c0_8 = arith.constant 0 : index
    %c0_9 = arith.constant 0 : index
    %28 = vector.load %arg4[%c0_7, %c0_8, %c0_9] : memref<1x256x128xf32, #tpu.memory_space<vmem>>, vector<1x256x128xf32>
    %29 = vector.shape_cast %28 : vector<1x256x128xf32> to vector<256x128xf32>
    %30 = vector.shape_cast %27 : vector<256x128xf32> to vector<1x256x128xf32>
    tpu.vector_store %arg4[%c0_7, %c0_8, %c0_9], %30 {strides = array<i32>} : memref<1x256x128xf32, #tpu.memory_space<vmem>>, vector<1x256x128xf32>,
    return
  }
  func.func @transform_0(%arg0: i32) -> (i32, i32, i32, i32) {
    %c0_i32 = arith.constant 0 : i32
    %c0_i32_0 = arith.constant 0 : i32
    %c0_i32_1 = arith.constant 0 : i32
    %c0_i32_2 = arith.constant 0 : i32
    return %arg0, %c0_i32, %c0_i32_0, %c0_i32_1 : i32, i32, i32, i32
  }
  func.func @transform_1(%arg0: i32) -> (i32, i32) {
    %c0_i32 = arith.constant 0 : i32
    %c0_i32_0 = arith.constant 0 : i32
    %c0_i32_1 = arith.constant 0 : i32
    return %c0_i32, %c0_i32_0 : i32, i32
  }
  func.func @transform_2(%arg0: i32) -> (i32, i32) {
    %c0_i32 = arith.constant 0 : i32
    %c0_i32_0 = arith.constant 0 : i32
    %c0_i32_1 = arith.constant 0 : i32
    return %c0_i32, %c0_i32_0 : i32, i32
  }
  func.func @transform_3(%arg0: i32) -> (i32, i32, i32) {
    %c0_i32 = arith.constant 0 : i32
    %c0_i32_0 = arith.constant 0 : i32
    %c0_i32_1 = arith.constant 0 : i32
    return %arg0, %c0_i32, %c0_i32_0 : i32, i32, i32
  }
}

</mosaic_0001>

<llo_original>
// kernel: _m2det_level_forward.1
$region0: #{_m2det_level_forward.1}
  #allocation0 [shape = 'u32[]', space=smem, size = 0x4, offset = 0x4, fixed_abs, tag = 'smem constant byte address 0x4 - core index']
  #allocation1 [shape = 'u32[144,128]{1,0:T(1,128)}', space=vmem, size = 0x12000, scoped, tag = 'internal scratch']
  %s0 = inlined_call_operand.vmem [shape: bf16[2,18,18,8], index: 0, kind: input, shape index: {}]
  %s1 = inlined_call_operand.vmem [shape: bf16[72,128], index: 1, kind: input, shape index: {}]
  %s2 = inlined_call_operand.vmem [shape: f32[1,128], index: 2, kind: input, shape index: {}]
  %s3 = inlined_call_operand.vmem [shape: f32[2,256,128], index: 3, kind: output, shape index: {}]
  %s4 = sld [smem:[#allocation0]]
  $region45: #{_m2det_level_forward.1} parent=0
    _
  %s6 = ssub.s32 1, %s4
  %s7 = scalar_select 0, %s6, %s4
  loop: start=0, step=1, limit=4
  $region2: #{_m2det_level_forward.1} parent=0 // loop_pre_header
    _
  $region3: #{_m2det_level_forward.1} parent=0 // loop_header
    %s9 = sphi 0, %s13
    %p10 = scmp.ge.s32.totalorder %s9, 4
    %s19 = sphi 0, %s21
    %s22 = sphi 0, %s19
    %s23 = sphi 0, %s22
    %s39 = sphi 0, %s23
    %s43 = sphi 0, %s43
    %s45 = sphi 0, %s43
    %s46 = sphi 0, %s45
    %s60 = sphi 0, %s46
    %s64 = sphi 0, %s64
    %s66 = sphi 0, %s64
    %s67 = sphi 0, %s66
    %s81 = sphi 0, %s67
    %s87 = sphi 0, %s89
    %s90 = sphi 0, %s87
    %s91 = sphi 0, %s90
    %s107 = sphi 0, %s91
  $region4: #{_m2det_level_forward.1} parent=0 // loop_header_branch
    %12 = sbr.rel (%p10) target = $region8
  $region5: #{_m2det_level_forward.1} parent=0 // loop_body
    %s14 = ssub.s32 %s9, 1
    %s15 = ssub.s32 %s9, 2
    %s16 = sadd.s32 %s9, 1
    %s17 = ssub.s32 %s9, %s16
    %p18 = scmp.eq.s32.totalorder %s17, 0
    %s20 = sadd.s32 %s19, 1
    %s21 = scalar_select %p18, %s19, %s20
    %p24 = pneg %p18
    %p25 = scmp.eq.s32.totalorder %s9, 1
    %p26 = por %p24, %p25
    %p27 = scmp.ne.s32.totalorder %s19, %s22
    %p28 = scmp.eq.s32.totalorder %s9, 0
    %p29 = por %p27, %p28
    %p30 = scmp.ne.s32.totalorder %s19, %s22
    %p31 = scmp.eq.s32.totalorder %s14, 1
    %p32 = por %p30, %p31
    %p33 = scmp.ne.s32.totalorder %s22, %s23
    %p34 = scmp.eq.s32.totalorder %s14, 0
    %p35 = por %p33, %p34
    %p36 = scmp.ne.s32.totalorder %s22, %s23
    %p37 = scmp.eq.s32.totalorder %s15, 1
    %p38 = por %p36, %p37
    %p40 = scmp.ne.s32.totalorder %s23, %s39
    %p41 = scmp.eq.s32.totalorder %s15, 0
    %p42 = por %p40, %p41
    %s44 = sadd.s32 %s43, 1
    %p47 = scmp.eq.s32.totalorder %s9, 1
    %p48 = scmp.ne.s32.totalorder %s43, %s45
    %p49 = scmp.eq.s32.totalorder %s9, 0
    %p50 = por %p48, %p49
    %p51 = scmp.ne.s32.totalorder %s43, %s45
    %p52 = scmp.eq.s32.totalorder %s14, 1
    %p53 = por %p51, %p52
    %p54 = scmp.ne.s32.totalorder %s45, %s46
    %p55 = scmp.eq.s32.totalorder %s14, 0
    %p56 = por %p54, %p55
    %p57 = scmp.ne.s32.totalorder %s45, %s46
    %p58 = scmp.eq.s32.totalorder %s15, 1
    %p59 = por %p57, %p58
    %p61 = scmp.ne.s32.totalorder %s46, %s60
    %p62 = scmp.eq.s32.totalorder %s15, 0
    %p63 = por %p61, %p62
    %s65 = sadd.s32 %s64, 1
    %p68 = scmp.eq.s32.totalorder %s9, 1
    %p69 = scmp.ne.s32.totalorder %s64, %s66
    %p70 = scmp.eq.s32.totalorder %s9, 0
    %p71 = por %p69, %p70
    %p72 = scmp.ne.s32.totalorder %s64, %s66
    %p73 = scmp.eq.s32.totalorder %s14, 1
    %p74 = por %p72, %p73
    %p75 = scmp.ne.s32.totalorder %s66, %s67
    %p76 = scmp.eq.s32.totalorder %s14, 0
    %p77 = por %p75, %p76
    %p78 = scmp.ne.s32.totalorder %s66, %s67
    %p79 = scmp.eq.s32.totalorder %s15, 1
    %p80 = por %p78, %p79
    %p82 = scmp.ne.s32.totalorder %s67, %s81
    %p83 = scmp.eq.s32.totalorder %s15, 0
    %p84 = por %p82, %p83
    %s85 = ssub.s32 %s9, %s16
    %p86 = scmp.eq.s32.totalorder %s85, 0
    %s88 = sadd.s32 %s87, 1
    %s89 = scalar_select %p86, %s87, %s88
    %p92 = pneg %p86
    %p93 = scmp.eq.s32.totalorder %s9, 1
    %p94 = por %p92, %p93
    %p95 = scmp.ne.s32.totalorder %s87, %s90
    %p96 = scmp.eq.s32.totalorder %s9, 0
    %p97 = por %p95, %p96
    %p98 = scmp.ne.s32.totalorder %s87, %s90
    %p99 = scmp.eq.s32.totalorder %s14, 1
    %p100 = por %p98, %p99
    %p101 = scmp.ne.s32.totalorder %s90, %s91
    %p102 = scmp.eq.s32.totalorder %s14, 0
    %p103 = por %p101, %p102
    %p104 = scmp.ne.s32.totalorder %s90, %s91
    %p105 = scmp.eq.s32.totalorder %s15, 1
    %p106 = por %p104, %p105
    %p108 = scmp.ne.s32.totalorder %s91, %s107
    %p109 = scmp.eq.s32.totalorder %s15, 0
    %p110 = por %p108, %p109
    %p111 = scmp.le.s32.totalorder 1, %s9
    %p112 = scmp.lt.s32.totalorder %s9, 3
    %p113 = pnand %p111, %p112
    %p114 = pneg %p113
    // Predicated region
    $region9: #{_m2det_level_forward.1} parent=5 // pred_check
      _
    $region10: #{_m2det_level_forward.1} parent=5 // pred_check_branch
      %116 = sbr.rel (%p113) target = $region12
    $region11: #{_m2det_level_forward.1} parent=5 // pred_region
      %s117 = ssub.s32 %s9, 1
      // Predicated region
      $region13: #{_m2det_level_forward.1} parent=11 // pred_check
        %p118 = pneg %p56
      $region14: #{_m2det_level_forward.1} parent=11 // pred_check_branch
        %120 = sbr.rel (%p118) target = $region16
      $region15: #{_m2det_level_forward.1} parent=11 // pred_region
        _
      $region16: #{_m2det_level_forward.1} parent=11 // pred_fallthru
        _
      // Predicated region
      $region17: #{_m2det_level_forward.1} parent=11 // pred_check
        %p121 = pneg %p77
      $region18: #{_m2det_level_forward.1} parent=11 // pred_check_branch
        %123 = sbr.rel (%p121) target = $region20
      $region19: #{_m2det_level_forward.1} parent=11 // pred_region
        _
      $region20: #{_m2det_level_forward.1} parent=11 // pred_fallthru
        _
    $region12: #{_m2det_level_forward.1} parent=5 // pred_fallthru
      _
    %p124 = scmp.lt.s32.totalorder %s9, 2
    // Predicated region
    $region21: #{_m2det_level_forward.1} parent=5 // pred_check
      %p125 = pneg %p124
    $region22: #{_m2det_level_forward.1} parent=5 // pred_check_branch
      %127 = sbr.rel (%p125) target = $region24
    $region23: #{_m2det_level_forward.1} parent=5 // pred_region
      // Predicated region
      $region25: #{_m2det_level_forward.1} parent=23 // pred_check
        %p128 = pneg %p29
      $region26: #{_m2det_level_forward.1} parent=23 // pred_check_branch
        %130 = sbr.rel (%p128) target = $region28
      $region27: #{_m2det_level_forward.1} parent=23 // pred_region
        %p131 = scmp.lt.s32.totalorder %s9, 1
        %s132 = scalar_select %p131, %s9, 1
        %s133 = smul.addr %s132, 54
        %s134 = smul.addr %s133, 4
        %s135 = scalar_lea.vmem %s0, %s134
      $region28: #{_m2det_level_forward.1} parent=23 // pred_fallthru
        _
    $region24: #{_m2det_level_forward.1} parent=5 // pred_fallthru
      _
    %p136 = scmp.le.s32.totalorder 1, %s9
    %p137 = scmp.lt.s32.totalorder %s9, 3
    %p138 = pnand %p136, %p137
    %p139 = pneg %p138
    // Predicated region
    $region29: #{_m2det_level_forward.1} parent=5 // pred_check
      _
    $region30: #{_m2det_level_forward.1} parent=5 // pred_check_branch
      %141 = sbr.rel (%p138) target = $region32
    $region31: #{_m2det_level_forward.1} parent=5 // pred_region
      %s142 = ssub.s32 %s9, 1
      %p143 = scmp.lt.s32.totalorder %s14, 1
      %s144 = scalar_select %p143, %s14, 1
      %s145 = smul.addr %s144, 54
      %s146 = smul.addr %s145, 4
      %s147 = scalar_lea.vmem %s0, %s146
      %p148 = pneg %p35
      %p149 = pneg %p32
      %p150 = pneg %p56
      %p151 = pneg %p53
      %p152 = pneg %p77
      %p153 = pneg %p74
      %p154 = pneg %p103
      %p155 = pneg %p100
      %p156 = scmp.lt.s32.totalorder %s14, 1
      %s157 = scalar_select %p156, %s14, 1
      %s158 = smul.addr %s157, 32
      %s159 = smul.addr %s158, 8
      %s160 = scalar_lea.vmem %s3, %s159
      %p161 = scmp.lt.s32.totalorder %s14, 1
      %s162 = scalar_select %p161, %s14, 1
      %s163 = smul.addr %s162, 54
      %s164 = smul.addr %s163, 4
      %s165 = scalar_lea.vmem %s0, %s164
      %p166 = scmp.lt.s32.totalorder %s14, 1
      %s167 = scalar_select %p166, %s14, 1
      %s168 = smul.addr %s167, 32
      %s169 = smul.addr %s168, 8
      %s170 = scalar_lea.vmem %s3, %s169
      %v172 = vld [vmem:[%s165] sm:$0xf]
      %v173 = vld [vmem:[%s165 + $0x4] sm:$0xf]
      %v174 = vld [vmem:[%s165 + $0x8] sm:$0x1]
      %v175 = vld [vmem:[%s165 + $0xc] sm:$0xf]
      %v176 = vld [vmem:[%s165 + $0x10] sm:$0xf]
      %v177 = vld [vmem:[%s165 + $0x14] sm:$0x1]
      %v178 = vld [vmem:[%s165 + $0x18] sm:$0xf]
      %v179 = vld [vmem:[%s165 + $0x1c] sm:$0xf]
      %v180 = vld [vmem:[%s165 + $0x20] sm:$0x1]
      %v181 = vld [vmem:[%s165 + $0x24] sm:$0xf]
      %v182 = vld [vmem:[%s165 + $0x28] sm:$0xf]
      %v183 = vld [vmem:[%s165 + $0x2c] sm:$0x1]
      %v184 = vld [vmem:[%s165 + $0x30] sm:$0xf]
      %v185 = vld [vmem:[%s165 + $0x34] sm:$0xf]
      %v186 = vld [vmem:[%s165 + $0x38] sm:$0x1]
      %v187 = vld [vmem:[%s165 + $0x3c] sm:$0xf]
      %v188 = vld [vmem:[%s165 + $0x40] sm:$0xf]
      %v189 = vld [vmem:[%s165 + $0x44] sm:$0x1]
      %v190 = vld [vmem:[%s165 + $0x48] sm:$0xf]
      %v191 = vld [vmem:[%s165 + $0x4c] sm:$0xf]
      %v192 = vld [vmem:[%s165 + $0x50] sm:$0x1]
      %v193 = vld [vmem:[%s165 + $0x54] sm:$0xf]
      %v194 = vld [vmem:[%s165 + $0x58] sm:$0xf]
      %v195 = vld [vmem:[%s165 + $0x5c] sm:$0x1]
      %v196 = vld [vmem:[%s165 + $0x60] sm:$0xf]
      %v197 = vld [vmem:[%s165 + $0x64] sm:$0xf]
      %v198 = vld [vmem:[%s165 + $0x68] sm:$0x1]
      %v199 = vld [vmem:[%s165 + $0x6c] sm:$0xf]
      %v200 = vld [vmem:[%s165 + $0x70] sm:$0xf]
      %v201 = vld [vmem:[%s165 + $0x74] sm:$0x1]
      %v202 = vld [vmem:[%s165 + $0x78] sm:$0xf]
      %v203 = vld [vmem:[%s165 + $0x7c] sm:$0xf]
      %v204 = vld [vmem:[%s165 + $0x80] sm:$0x1]
      %v205 = vld [vmem:[%s165 + $0x84] sm:$0xf]
      %v206 = vld [vmem:[%s165 + $0x88] sm:$0xf]
      %v207 = vld [vmem:[%s165 + $0x8c] sm:$0x1]
      %v208 = vld [vmem:[%s165 + $0x90] sm:$0xf]
      %v209 = vld [vmem:[%s165 + $0x94] sm:$0xf]
      %v210 = vld [vmem:[%s165 + $0x98] sm:$0x1]
      %v211 = vld [vmem:[%s165 + $0x9c] sm:$0xf]
      %v212 = vld [vmem:[%s165 + $0xa0] sm:$0xf]
      %v213 = vld [vmem:[%s165 + $0xa4] sm:$0x1]
      %v214 = vld [vmem:[%s165 + $0xa8] sm:$0xf]
      %v215 = vld [vmem:[%s165 + $0xac] sm:$0xf]
      %v216 = vld [vmem:[%s165 + $0xb0] sm:$0x1]
      %v217 = vld [vmem:[%s165 + $0xb4] sm:$0xf]
      %v218 = vld [vmem:[%s165 + $0xb8] sm:$0xf]
      %v219 = vld [vmem:[%s165 + $0xbc] sm:$0x1]
      %v220 = vld [vmem:[%s165 + $0xc0] sm:$0xf]
      %v221 = vld [vmem:[%s165 + $0xc4] sm:$0xf]
      %v222 = vld [vmem:[%s165 + $0xc8] sm:$0x1]
      %v223 = vld [vmem:[%s165 + $0xcc] sm:$0xf]
      %v224 = vld [vmem:[%s165 + $0xd0] sm:$0xf]
      %v225 = vld [vmem:[%s165 + $0xd4] sm:$0x1]
      %v226 = vunpack.c.l.bf16 %v172
      %v227 = vunpack.c.l.bf16 %v173
      %v228 = vunpack.c.l.bf16 %v174
      %v229 = vunpack.c.l.bf16 %v175
      %v230 = vunpack.c.l.bf16 %v176
      %v231 = vunpack.c.l.bf16 %v177
      %v232 = vunpack.c.l.bf16 %v178
      %v233 = vunpack.c.l.bf16 %v179
      %v234 = vunpack.c.l.bf16 %v180
      %v235 = vunpack.c.l.bf16 %v181
      %v236 = vunpack.c.l.bf16 %v182
      %v237 = vunpack.c.l.bf16 %v183
      %v238 = vunpack.c.l.bf16 %v184
      %v239 = vunpack.c.l.bf16 %v185
      %v240 = vunpack.c.l.bf16 %v186
      %v241 = vunpack.c.l.bf16 %v187
      %v242 = vunpack.c.l.bf16 %v188
      %v243 = vunpack.c.l.bf16 %v189
      %v244 = vunpack.c.l.bf16 %v190
      %v245 = vunpack.c.l.bf16 %v191
      %v246 = vunpack.c.l.bf16 %v192
      %v247 = vunpack.c.l.bf16 %v193
      %v248 = vunpack.c.l.bf16 %v194
      %v249 = vunpack.c.l.bf16 %v195
      %v250 = vunpack.c.l.bf16 %v196
      %v251 = vunpack.c.l.bf16 %v197
      %v252 = vunpack.c.l.bf16 %v198
      %v253 = vunpack.c.l.bf16 %v199
      %v254 = vunpack.c.l.bf16 %v200
      %v255 = vunpack.c.l.bf16 %v201
      %v256 = vunpack.c.l.bf16 %v202
      %v257 = vunpack.c.l.bf16 %v203
      %v258 = vunpack.c.l.bf16 %v204
      %v259 = vunpack.c.l.bf16 %v205
      %v260 = vunpack.c.l.bf16 %v206
      %v261 = vunpack.c.l.bf16 %v207
      %v262 = vunpack.c.l.bf16 %v208
      %v263 = vunpack.c.l.bf16 %v209
      %v264 = vunpack.c.l.bf16 %v210
      %v265 = vunpack.c.l.bf16 %v211
      %v266 = vunpack.c.l.bf16 %v212
      %v267 = vunpack.c.l.bf16 %v213
      %v268 = vunpack.c.l.bf16 %v214
      %v269 = vunpack.c.l.bf16 %v215
      %v270 = vunpack.c.l.bf16 %v216
      %v271 = vunpack.c.l.bf16 %v217
      %v272 = vunpack.c.l.bf16 %v218
      %v273 = vunpack.c.l.bf16 %v219
      %v274 = vunpack.c.l.bf16 %v220
      %v275 = vunpack.c.l.bf16 %v221
      %v276 = vunpack.c.l.bf16 %v222
      %v277 = vunpack.c.l.bf16 %v223
      %v278 = vunpack.c.l.bf16 %v224
      %v279 = vunpack.c.l.bf16 %v225
      %vm328 = vcmask 1046528
      %v329 = vrot.slane %v226, 1
      %v330 = vrot.slane %v227, 1
      %v331 = vsel %vm328, %v329, %v330
      %v332 = vrot.slane %v228, 1
      %v333 = vsel %vm328, %v330, %v332
      %v334 = vrot.slane %v229, 1
      %v335 = vrot.slane %v230, 1
      %v336 = vsel %vm328, %v334, %v335
      %v337 = vrot.slane %v231, 1
      %v338 = vsel %vm328, %v335, %v337
      %v339 = vrot.slane %v232, 1
      %v340 = vrot.slane %v233, 1
      %v341 = vsel %vm328, %v339, %v340
      %v342 = vrot.slane %v234, 1
      %v343 = vsel %vm328, %v340, %v342
      %v344 = vrot.slane %v235, 1
      %v345 = vrot.slane %v236, 1
      %v346 = vsel %vm328, %v344, %v345
      %v347 = vrot.slane %v237, 1
      %v348 = vsel %vm328, %v345, %v347
      %v349 = vrot.slane %v238, 1
      %v350 = vrot.slane %v239, 1
      %v351 = vsel %vm328, %v349, %v350
      %v352 = vrot.slane %v240, 1
      %v353 = vsel %vm328, %v350, %v352
      %v354 = vrot.slane %v241, 1
      %v355 = vrot.slane %v242, 1
      %v356 = vsel %vm328, %v354, %v355
      %v357 = vrot.slane %v243, 1
      %v358 = vsel %vm328, %v355, %v357
      %v359 = vrot.slane %v244, 1
      %v360 = vrot.slane %v245, 1
      %v361 = vsel %vm328, %v359, %v360
      %v362 = vrot.slane %v246, 1
      %v363 = vsel %vm328, %v360, %v362
      %v364 = vrot.slane %v247, 1
      %v365 = vrot.slane %v248, 1
      %v366 = vsel %vm328, %v364, %v365
      %v367 = vrot.slane %v249, 1
      %v368 = vsel %vm328, %v365, %v367
      %v369 = vrot.slane %v250, 1
      %v370 = vrot.slane %v251, 1
      %v371 = vsel %vm328, %v369, %v370
      %v372 = vrot.slane %v252, 1
      %v373 = vsel %vm328, %v370, %v372
      %v374 = vrot.slane %v253, 1
      %v375 = vrot.slane %v254, 1
      %v376 = vsel %vm328, %v374, %v375
      %v377 = vrot.slane %v255, 1
      %v378 = vsel %vm328, %v375, %v377
      %v379 = vrot.slane %v256, 1
      %v380 = vrot.slane %v257, 1
      %v381 = vsel %vm328, %v379, %v380
      %v382 = vrot.slane %v258, 1
      %v383 = vsel %vm328, %v380, %v382
      %v384 = vrot.slane %v259, 1
      %v385 = vrot.slane %v260, 1
      %v386 = vsel %vm328, %v384, %v385
      %v387 = vrot.slane %v261, 1
      %v388 = vsel %vm328, %v385, %v387
      %v389 = vrot.slane %v262, 1
      %v390 = vrot.slane %v263, 1
      %v391 = vsel %vm328, %v389, %v390
      %v392 = vrot.slane %v264, 1
      %v393 = vsel %vm328, %v390, %v392
      %v394 = vrot.slane %v265, 1
      %v395 = vrot.slane %v266, 1
      %v396 = vsel %vm328, %v394, %v395
      %v397 = vrot.slane %v267, 1
      %v398 = vsel %vm328, %v395, %v397
      %v399 = vrot.slane %v268, 1
      %v400 = vrot.slane %v269, 1
      %v401 = vsel %vm328, %v399, %v400
      %v402 = vrot.slane %v270, 1
      %v403 = vsel %vm328, %v400, %v402
      %v404 = vrot.slane %v271, 1
      %v405 = vrot.slane %v272, 1
      %v406 = vsel %vm328, %v404, %v405
      %v407 = vrot.slane %v273, 1
      %v408 = vsel %vm328, %v405, %v407
      %vm409 = vcmask 1045504
      %v410 = vrot.slane %v226, 2
      %v411 = vrot.slane %v227, 2
      %v412 = vsel %vm409, %v410, %v411
      %v413 = vrot.slane %v228, 2
      %v414 = vsel %vm409, %v411, %v413
      %v415 = vrot.slane %v229, 2
      %v416 = vrot.slane %v230, 2
      %v417 = vsel %vm409, %v415, %v416
      %v418 = vrot.slane %v231, 2
      %v419 = vsel %vm409, %v416, %v418
      %v420 = vrot.slane %v232, 2
      %v421 = vrot.slane %v233, 2
      %v422 = vsel %vm409, %v420, %v421
      %v423 = vrot.slane %v234, 2
      %v424 = vsel %vm409, %v421, %v423
      %v425 = vrot.slane %v235, 2
      %v426 = vrot.slane %v236, 2
      %v427 = vsel %vm409, %v425, %v426
      %v428 = vrot.slane %v237, 2
      %v429 = vsel %vm409, %v426, %v428
      %v430 = vrot.slane %v238, 2
      %v431 = vrot.slane %v239, 2
      %v432 = vsel %vm409, %v430, %v431
      %v433 = vrot.slane %v240, 2
      %v434 = vsel %vm409, %v431, %v433
      %v435 = vrot.slane %v241, 2
      %v436 = vrot.slane %v242, 2
      %v437 = vsel %vm409, %v435, %v436
      %v438 = vrot.slane %v243, 2
      %v439 = vsel %vm409, %v436, %v438
      %v440 = vrot.slane %v244, 2
      %v441 = vrot.slane %v245, 2
      %v442 = vsel %vm409, %v440, %v441
      %v443 = vrot.slane %v246, 2
      %v444 = vsel %vm409, %v441, %v443
      %v445 = vrot.slane %v247, 2
      %v446 = vrot.slane %v248, 2
      %v447 = vsel %vm409, %v445, %v446
      %v448 = vrot.slane %v249, 2
      %v449 = vsel %vm409, %v446, %v448
      %v450 = vrot.slane %v250, 2
      %v451 = vrot.slane %v251, 2
      %v452 = vsel %vm409, %v450, %v451
      %v453 = vrot.slane %v252, 2
      %v454 = vsel %vm409, %v451, %v453
      %v455 = vrot.slane %v253, 2
      %v456 = vrot.slane %v254, 2
      %v457 = vsel %vm409, %v455, %v456
      %v458 = vrot.slane %v255, 2
      %v459 = vsel %vm409, %v456, %v458
      %v460 = vrot.slane %v256, 2
      %v461 = vrot.slane %v257, 2
      %v462 = vsel %vm409, %v460, %v461
      %v463 = vrot.slane %v258, 2
      %v464 = vsel %vm409, %v461, %v463
      %v465 = vrot.slane %v259, 2
      %v466 = vrot.slane %v260, 2
      %v467 = vsel %vm409, %v465, %v466
      %v468 = vrot.slane %v261, 2
      %v469 = vsel %vm409, %v466, %v468
      %v470 = vrot.slane %v262, 2
      %v471 = vrot.slane %v263, 2
      %v472 = vsel %vm409, %v470, %v471
      %v473 = vrot.slane %v264, 2
      %v474 = vsel %vm409, %v471, %v473
      %v475 = vrot.slane %v265, 2
      %v476 = vrot.slane %v266, 2
      %v477 = vsel %vm409, %v475, %v476
      %v478 = vrot.slane %v267, 2
      %v479 = vsel %vm409, %v476, %v478
      %v480 = vrot.slane %v268, 2
      %v481 = vrot.slane %v269, 2
      %v482 = vsel %vm409, %v480, %v481
      %v483 = vrot.slane %v270, 2
      %v484 = vsel %vm409, %v481, %v483
      %v485 = vrot.slane %v271, 2
      %v486 = vrot.slane %v272, 2
      %v487 = vsel %vm409, %v485, %v486
      %v488 = vrot.slane %v273, 2
      %v489 = vsel %vm409, %v486, %v488
      %v493 = vrot.slane %v274, 1
      %v494 = vrot.slane %v275, 1
      %v495 = vsel %vm328, %v493, %v494
      %v496 = vrot.slane %v276, 1
      %v497 = vsel %vm328, %v494, %v496
      %v498 = vrot.slane %v274, 2
      %v499 = vrot.slane %v275, 2
      %v500 = vsel %vm409, %v498, %v499
      %v501 = vrot.slane %v276, 2
      %v502 = vsel %vm409, %v499, %v501
      %v506 = vrot.slane %v277, 1
      %v507 = vrot.slane %v278, 1
      %v508 = vsel %vm328, %v506, %v507
      %v509 = vrot.slane %v279, 1
      %v510 = vsel %vm328, %v507, %v509
      %v511 = vrot.slane %v277, 2
      %v512 = vrot.slane %v278, 2
      %v513 = vsel %vm409, %v511, %v512
      %v514 = vrot.slane %v279, 2
      %v515 = vsel %vm409, %v512, %v514
      %516 = vrot.lane.b32.xlu0 %v331, 8
      %v517 = vpop.permute.xlu0 %516
      %518 = vrot.lane.b32.xlu0 %v333, 8
      %v519 = vpop.permute.xlu0 %518
      %520 = vrot.lane.b32.xlu0 %v336, 8
      %v521 = vpop.permute.xlu0 %520
      %522 = vrot.lane.b32.xlu0 %v338, 8
      %v523 = vpop.permute.xlu0 %522
      %524 = vrot.lane.b32.xlu0 %v341, 8
      %v525 = vpop.permute.xlu0 %524
      %526 = vrot.lane.b32.xlu0 %v343, 8
      %v527 = vpop.permute.xlu0 %526
      %528 = vrot.lane.b32.xlu0 %v346, 8
      %v529 = vpop.permute.xlu0 %528
      %530 = vrot.lane.b32.xlu0 %v348, 8
      %v531 = vpop.permute.xlu0 %530
      %532 = vrot.lane.b32.xlu0 %v351, 8
      %v533 = vpop.permute.xlu0 %532
      %534 = vrot.lane.b32.xlu0 %v353, 8
      %v535 = vpop.permute.xlu0 %534
      %536 = vrot.lane.b32.xlu0 %v356, 8
      %v537 = vpop.permute.xlu0 %536
      %538 = vrot.lane.b32.xlu0 %v358, 8
      %v539 = vpop.permute.xlu0 %538
      %540 = vrot.lane.b32.xlu0 %v361, 8
      %v541 = vpop.permute.xlu0 %540
      %542 = vrot.lane.b32.xlu0 %v363, 8
      %v543 = vpop.permute.xlu0 %542
      %544 = vrot.lane.b32.xlu0 %v366, 8
      %v545 = vpop.permute.xlu0 %544
      %546 = vrot.lane.b32.xlu0 %v368, 8
      %v547 = vpop.permute.xlu0 %546
      %548 = vrot.lane.b32.xlu0 %v371, 8
      %v549 = vpop.permute.xlu0 %548
      %550 = vrot.lane.b32.xlu0 %v373, 8
      %v551 = vpop.permute.xlu0 %550
      %552 = vrot.lane.b32.xlu0 %v376, 8
      %v553 = vpop.permute.xlu0 %552
      %554 = vrot.lane.b32.xlu0 %v378, 8
      %v555 = vpop.permute.xlu0 %554
      %556 = vrot.lane.b32.xlu0 %v381, 8
      %v557 = vpop.permute.xlu0 %556
      %558 = vrot.lane.b32.xlu0 %v383, 8
      %v559 = vpop.permute.xlu0 %558
      %560 = vrot.lane.b32.xlu0 %v386, 8
      %v561 = vpop.permute.xlu0 %560
      %562 = vrot.lane.b32.xlu0 %v388, 8
      %v563 = vpop.permute.xlu0 %562
      %564 = vrot.lane.b32.xlu0 %v391, 8
      %v565 = vpop.permute.xlu0 %564
      %566 = vrot.lane.b32.xlu0 %v393, 8
      %v567 = vpop.permute.xlu0 %566
      %568 = vrot.lane.b32.xlu0 %v396, 8
      %v569 = vpop.permute.xlu0 %568
      %570 = vrot.lane.b32.xlu0 %v398, 8
      %v571 = vpop.permute.xlu0 %570
      %572 = vrot.lane.b32.xlu0 %v401, 8
      %v573 = vpop.permute.xlu0 %572
      %574 = vrot.lane.b32.xlu0 %v403, 8
      %v575 = vpop.permute.xlu0 %574
      %576 = vrot.lane.b32.xlu0 %v406, 8
      %v577 = vpop.permute.xlu0 %576
      %578 = vrot.lane.b32.xlu0 %v408, 8
      %v579 = vpop.permute.xlu0 %578
      %612 = vrot.lane.b32.xlu0 %v412, 16
      %v613 = vpop.permute.xlu0 %612
      %614 = vrot.lane.b32.xlu0 %v414, 16
      %v615 = vpop.permute.xlu0 %614
      %616 = vrot.lane.b32.xlu0 %v417, 16
      %v617 = vpop.permute.xlu0 %616
      %618 = vrot.lane.b32.xlu0 %v419, 16
      %v619 = vpop.permute.xlu0 %618
      %620 = vrot.lane.b32.xlu0 %v422, 16
      %v621 = vpop.permute.xlu0 %620
      %622 = vrot.lane.b32.xlu0 %v424, 16
      %v623 = vpop.permute.xlu0 %622
      %624 = vrot.lane.b32.xlu0 %v427, 16
      %v625 = vpop.permute.xlu0 %624
      %626 = vrot.lane.b32.xlu0 %v429, 16
      %v627 = vpop.permute.xlu0 %626
      %628 = vrot.lane.b32.xlu0 %v432, 16
      %v629 = vpop.permute.xlu0 %628
      %630 = vrot.lane.b32.xlu0 %v434, 16
      %v631 = vpop.permute.xlu0 %630
      %632 = vrot.lane.b32.xlu0 %v437, 16
      %v633 = vpop.permute.xlu0 %632
      %634 = vrot.lane.b32.xlu0 %v439, 16
      %v635 = vpop.permute.xlu0 %634
      %636 = vrot.lane.b32.xlu0 %v442, 16
      %v637 = vpop.permute.xlu0 %636
      %638 = vrot.lane.b32.xlu0 %v444, 16
      %v639 = vpop.permute.xlu0 %638
      %640 = vrot.lane.b32.xlu0 %v447, 16
      %v641 = vpop.permute.xlu0 %640
      %642 = vrot.lane.b32.xlu0 %v449, 16
      %v643 = vpop.permute.xlu0 %642
      %644 = vrot.lane.b32.xlu0 %v452, 16
      %v645 = vpop.permute.xlu0 %644
      %646 = vrot.lane.b32.xlu0 %v454, 16
      %v647 = vpop.permute.xlu0 %646
      %648 = vrot.lane.b32.xlu0 %v457, 16
      %v649 = vpop.permute.xlu0 %648
      %650 = vrot.lane.b32.xlu0 %v459, 16
      %v651 = vpop.permute.xlu0 %650
      %652 = vrot.lane.b32.xlu0 %v462, 16
      %v653 = vpop.permute.xlu0 %652
      %654 = vrot.lane.b32.xlu0 %v464, 16
      %v655 = vpop.permute.xlu0 %654
      %656 = vrot.lane.b32.xlu0 %v467, 16
      %v657 = vpop.permute.xlu0 %656
      %658 = vrot.lane.b32.xlu0 %v469, 16
      %v659 = vpop.permute.xlu0 %658
      %660 = vrot.lane.b32.xlu0 %v472, 16
      %v661 = vpop.permute.xlu0 %660
      %662 = vrot.lane.b32.xlu0 %v474, 16
      %v663 = vpop.permute.xlu0 %662
      %664 = vrot.lane.b32.xlu0 %v477, 16
      %v665 = vpop.permute.xlu0 %664
      %666 = vrot.lane.b32.xlu0 %v479, 16
      %v667 = vpop.permute.xlu0 %666
      %668 = vrot.lane.b32.xlu0 %v482, 16
      %v669 = vpop.permute.xlu0 %668
      %670 = vrot.lane.b32.xlu0 %v484, 16
      %v671 = vpop.permute.xlu0 %670
      %672 = vrot.lane.b32.xlu0 %v487, 16
      %v673 = vpop.permute.xlu0 %672
      %674 = vrot.lane.b32.xlu0 %v489, 16
      %v675 = vpop.permute.xlu0 %674
      %708 = vrot.lane.b32.xlu0 %v229, 24
      %v709 = vpop.permute.xlu0 %708
      %710 = vrot.lane.b32.xlu0 %v230, 24
      %v711 = vpop.permute.xlu0 %710
      %712 = vrot.lane.b32.xlu0 %v232, 24
      %v713 = vpop.permute.xlu0 %712
      %714 = vrot.lane.b32.xlu0 %v233, 24
      %v715 = vpop.permute.xlu0 %714
      %716 = vrot.lane.b32.xlu0 %v235, 24
      %v717 = vpop.permute.xlu0 %716
      %718 = vrot.lane.b32.xlu0 %v236, 24
      %v719 = vpop.permute.xlu0 %718
      %720 = vrot.lane.b32.xlu0 %v238, 24
      %v721 = vpop.permute.xlu0 %720
      %722 = vrot.lane.b32.xlu0 %v239, 24
      %v723 = vpop.permute.xlu0 %722
      %724 = vrot.lane.b32.xlu0 %v241, 24
      %v725 = vpop.permute.xlu0 %724
      %726 = vrot.lane.b32.xlu0 %v242, 24
      %v727 = vpop.permute.xlu0 %726
      %728 = vrot.lane.b32.xlu0 %v244, 24
      %v729 = vpop.permute.xlu0 %728
      %730 = vrot.lane.b32.xlu0 %v245, 24
      %v731 = vpop.permute.xlu0 %730
      %732 = vrot.lane.b32.xlu0 %v247, 24
      %v733 = vpop.permute.xlu0 %732
      %734 = vrot.lane.b32.xlu0 %v248, 24
      %v735 = vpop.permute.xlu0 %734
      %736 = vrot.lane.b32.xlu0 %v250, 24
      %v737 = vpop.permute.xlu0 %736
      %738 = vrot.lane.b32.xlu0 %v251, 24
      %v739 = vpop.permute.xlu0 %738
      %740 = vrot.lane.b32.xlu0 %v253, 24
      %v741 = vpop.permute.xlu0 %740
      %742 = vrot.lane.b32.xlu0 %v254, 24
      %v743 = vpop.permute.xlu0 %742
      %744 = vrot.lane.b32.xlu0 %v256, 24
      %v745 = vpop.permute.xlu0 %744
      %746 = vrot.lane.b32.xlu0 %v257, 24
      %v747 = vpop.permute.xlu0 %746
      %748 = vrot.lane.b32.xlu0 %v259, 24
      %v749 = vpop.permute.xlu0 %748
      %750 = vrot.lane.b32.xlu0 %v260, 24
      %v751 = vpop.permute.xlu0 %750
      %752 = vrot.lane.b32.xlu0 %v262, 24
      %v753 = vpop.permute.xlu0 %752
      %754 = vrot.lane.b32.xlu0 %v263, 24
      %v755 = vpop.permute.xlu0 %754
      %756 = vrot.lane.b32.xlu0 %v265, 24
      %v757 = vpop.permute.xlu0 %756
      %758 = vrot.lane.b32.xlu0 %v266, 24
      %v759 = vpop.permute.xlu0 %758
      %760 = vrot.lane.b32.xlu0 %v268, 24
      %v761 = vpop.permute.xlu0 %760
      %762 = vrot.lane.b32.xlu0 %v269, 24
      %v763 = vpop.permute.xlu0 %762
      %764 = vrot.lane.b32.xlu0 %v271, 24
      %v765 = vpop.permute.xlu0 %764
      %766 = vrot.lane.b32.xlu0 %v272, 24
      %v767 = vpop.permute.xlu0 %766
      %768 = vrot.lane.b32.xlu0 %v274, 24
      %v769 = vpop.permute.xlu0 %768
      %770 = vrot.lane.b32.xlu0 %v275, 24
      %v771 = vpop.permute.xlu0 %770
      %804 = vrot.lane.b32.xlu0 %v336, 32
      %v805 = vpop.permute.xlu0 %804
      %806 = vrot.lane.b32.xlu0 %v338, 32
      %v807 = vpop.permute.xlu0 %806
      %808 = vrot.lane.b32.xlu0 %v341, 32
      %v809 = vpop.permute.xlu0 %808
      %810 = vrot.lane.b32.xlu0 %v343, 32
      %v811 = vpop.permute.xlu0 %810
      %812 = vrot.lane.b32.xlu0 %v346, 32
      %v813 = vpop.permute.xlu0 %812
      %814 = vrot.lane.b32.xlu0 %v348, 32
      %v815 = vpop.permute.xlu0 %814
      %816 = vrot.lane.b32.xlu0 %v351, 32
      %v817 = vpop.permute.xlu0 %816
      %818 = vrot.lane.b32.xlu0 %v353, 32
      %v819 = vpop.permute.xlu0 %818
      %820 = vrot.lane.b32.xlu0 %v356, 32
      %v821 = vpop.permute.xlu0 %820
      %822 = vrot.lane.b32.xlu0 %v358, 32
      %v823 = vpop.permute.xlu0 %822
      %824 = vrot.lane.b32.xlu0 %v361, 32
      %v825 = vpop.permute.xlu0 %824
      %826 = vrot.lane.b32.xlu0 %v363, 32
      %v827 = vpop.permute.xlu0 %826
      %828 = vrot.lane.b32.xlu0 %v366, 32
      %v829 = vpop.permute.xlu0 %828
      %830 = vrot.lane.b32.xlu0 %v368, 32
      %v831 = vpop.permute.xlu0 %830
      %832 = vrot.lane.b32.xlu0 %v371, 32
      %v833 = vpop.permute.xlu0 %832
      %834 = vrot.lane.b32.xlu0 %v373, 32
      %v835 = vpop.permute.xlu0 %834
      %836 = vrot.lane.b32.xlu0 %v376, 32
      %v837 = vpop.permute.xlu0 %836
      %838 = vrot.lane.b32.xlu0 %v378, 32
      %v839 = vpop.permute.xlu0 %838
      %840 = vrot.lane.b32.xlu0 %v381, 32
      %v841 = vpop.permute.xlu0 %840
      %842 = vrot.lane.b32.xlu0 %v383, 32
      %v843 = vpop.permute.xlu0 %842
      %844 = vrot.lane.b32.xlu0 %v386, 32
      %v845 = vpop.permute.xlu0 %844
      %846 = vrot.lane.b32.xlu0 %v388, 32
      %v847 = vpop.permute.xlu0 %846
      %848 = vrot.lane.b32.xlu0 %v391, 32
      %v849 = vpop.permute.xlu0 %848
      %850 = vrot.lane.b32.xlu0 %v393, 32
      %v851 = vpop.permute.xlu0 %850
      %852 = vrot.lane.b32.xlu0 %v396, 32
      %v853 = vpop.permute.xlu0 %852
      %854 = vrot.lane.b32.xlu0 %v398, 32
      %v855 = vpop.permute.xlu0 %854
      %856 = vrot.lane.b32.xlu0 %v401, 32
      %v857 = vpop.permute.xlu0 %856
      %858 = vrot.lane.b32.xlu0 %v403, 32
      %v859 = vpop.permute.xlu0 %858
      %860 = vrot.lane.b32.xlu0 %v406, 32
      %v861 = vpop.permute.xlu0 %860
      %862 = vrot.lane.b32.xlu0 %v408, 32
      %v863 = vpop.permute.xlu0 %862
      %864 = vrot.lane.b32.xlu0 %v495, 32
      %v865 = vpop.permute.xlu0 %864
      %866 = vrot.lane.b32.xlu0 %v497, 32
      %v867 = vpop.permute.xlu0 %866
      %900 = vrot.lane.b32.xlu0 %v417, 40
      %v901 = vpop.permute.xlu0 %900
      %902 = vrot.lane.b32.xlu0 %v419, 40
      %v903 = vpop.permute.xlu0 %902
      %904 = vrot.lane.b32.xlu0 %v422, 40
      %v905 = vpop.permute.xlu0 %904
      %906 = vrot.lane.b32.xlu0 %v424, 40
      %v907 = vpop.permute.xlu0 %906
      %908 = vrot.lane.b32.xlu0 %v427, 40
      %v909 = vpop.permute.xlu0 %908
      %910 = vrot.lane.b32.xlu0 %v429, 40
      %v911 = vpop.permute.xlu0 %910
      %912 = vrot.lane.b32.xlu0 %v432, 40
      %v913 = vpop.permute.xlu0 %912
      %914 = vrot.lane.b32.xlu0 %v434, 40
      %v915 = vpop.permute.xlu0 %914
      %916 = vrot.lane.b32.xlu0 %v437, 40
      %v917 = vpop.permute.xlu0 %916
      %918 = vrot.lane.b32.xlu0 %v439, 40
      %v919 = vpop.permute.xlu0 %918
      %920 = vrot.lane.b32.xlu0 %v442, 40
      %v921 = vpop.permute.xlu0 %920
      %922 = vrot.lane.b32.xlu0 %v444, 40
      %v923 = vpop.permute.xlu0 %922
      %924 = vrot.lane.b32.xlu0 %v447, 40
      %v925 = vpop.permute.xlu0 %924
      %926 = vrot.lane.b32.xlu0 %v449, 40
      %v927 = vpop.permute.xlu0 %926
      %928 = vrot.lane.b32.xlu0 %v452, 40
      %v929 = vpop.permute.xlu0 %928
      %930 = vrot.lane.b32.xlu0 %v454, 40
      %v931 = vpop.permute.xlu0 %930
      %932 = vrot.lane.b32.xlu0 %v457, 40
      %v933 = vpop.permute.xlu0 %932
      %934 = vrot.lane.b32.xlu0 %v459, 40
      %v935 = vpop.permute.xlu0 %934
      %936 = vrot.lane.b32.xlu0 %v462, 40
      %v937 = vpop.permute.xlu0 %936
      %938 = vrot.lane.b32.xlu0 %v464, 40
      %v939 = vpop.permute.xlu0 %938
      %940 = vrot.lane.b32.xlu0 %v467, 40
      %v941 = vpop.permute.xlu0 %940
      %942 = vrot.lane.b32.xlu0 %v469, 40
      %v943 = vpop.permute.xlu0 %942
      %944 = vrot.lane.b32.xlu0 %v472, 40
      %v945 = vpop.permute.xlu0 %944
      %946 = vrot.lane.b32.xlu0 %v474, 40
      %v947 = vpop.permute.xlu0 %946
      %948 = vrot.lane.b32.xlu0 %v477, 40
      %v949 = vpop.permute.xlu0 %948
      %950 = vrot.lane.b32.xlu0 %v479, 40
      %v951 = vpop.permute.xlu0 %950
      %952 = vrot.lane.b32.xlu0 %v482, 40
      %v953 = vpop.permute.xlu0 %952
      %954 = vrot.lane.b32.xlu0 %v484, 40
      %v955 = vpop.permute.xlu0 %954
      %956 = vrot.lane.b32.xlu0 %v487, 40
      %v957 = vpop.permute.xlu0 %956
      %958 = vrot.lane.b32.xlu0 %v489, 40
      %v959 = vpop.permute.xlu0 %958
      %960 = vrot.lane.b32.xlu0 %v500, 40
      %v961 = vpop.permute.xlu0 %960
      %962 = vrot.lane.b32.xlu0 %v502, 40
      %v963 = vpop.permute.xlu0 %962
      %996 = vrot.lane.b32.xlu0 %v232, 48
      %v997 = vpop.permute.xlu0 %996
      %998 = vrot.lane.b32.xlu0 %v233, 48
      %v999 = vpop.permute.xlu0 %998
      %1000 = vrot.lane.b32.xlu0 %v235, 48
      %v1001 = vpop.permute.xlu0 %1000
      %1002 = vrot.lane.b32.xlu0 %v236, 48
      %v1003 = vpop.permute.xlu0 %1002
      %1004 = vrot.lane.b32.xlu0 %v238, 48
      %v1005 = vpop.permute.xlu0 %1004
      %1006 = vrot.lane.b32.xlu0 %v239, 48
      %v1007 = vpop.permute.xlu0 %1006
      %1008 = vrot.lane.b32.xlu0 %v241, 48
      %v1009 = vpop.permute.xlu0 %1008
      %1010 = vrot.lane.b32.xlu0 %v242, 48
      %v1011 = vpop.permute.xlu0 %1010
      %1012 = vrot.lane.b32.xlu0 %v244, 48
      %v1013 = vpop.permute.xlu0 %1012
      %1014 = vrot.lane.b32.xlu0 %v245, 48
      %v1015 = vpop.permute.xlu0 %1014
      %1016 = vrot.lane.b32.xlu0 %v247, 48
      %v1017 = vpop.permute.xlu0 %1016
      %1018 = vrot.lane.b32.xlu0 %v248, 48
      %v1019 = vpop.permute.xlu0 %1018
      %1020 = vrot.lane.b32.xlu0 %v250, 48
      %v1021 = vpop.permute.xlu0 %1020
      %1022 = vrot.lane.b32.xlu0 %v251, 48
      %v1023 = vpop.permute.xlu0 %1022
      %1024 = vrot.lane.b32.xlu0 %v253, 48
      %v1025 = vpop.permute.xlu0 %1024
      %1026 = vrot.lane.b32.xlu0 %v254, 48
      %v1027 = vpop.permute.xlu0 %1026
      %1028 = vrot.lane.b32.xlu0 %v256, 48
      %v1029 = vpop.permute.xlu0 %1028
      %1030 = vrot.lane.b32.xlu0 %v257, 48
      %v1031 = vpop.permute.xlu0 %1030
      %1032 = vrot.lane.b32.xlu0 %v259, 48
      %v1033 = vpop.permute.xlu0 %1032
      %1034 = vrot.lane.b32.xlu0 %v260, 48
      %v1035 = vpop.permute.xlu0 %1034
      %1036 = vrot.lane.b32.xlu0 %v262, 48
      %v1037 = vpop.permute.xlu0 %1036
      %1038 = vrot.lane.b32.xlu0 %v263, 48
      %v1039 = vpop.permute.xlu0 %1038
      %1040 = vrot.lane.b32.xlu0 %v265, 48
      %v1041 = vpop.permute.xlu0 %1040
      %1042 = vrot.lane.b32.xlu0 %v266, 48
      %v1043 = vpop.permute.xlu0 %1042
      %1044 = vrot.lane.b32.xlu0 %v268, 48
      %v1045 = vpop.permute.xlu0 %1044
      %1046 = vrot.lane.b32.xlu0 %v269, 48
      %v1047 = vpop.permute.xlu0 %1046
      %1048 = vrot.lane.b32.xlu0 %v271, 48
      %v1049 = vpop.permute.xlu0 %1048
      %1050 = vrot.lane.b32.xlu0 %v272, 48
      %v1051 = vpop.permute.xlu0 %1050
      %1052 = vrot.lane.b32.xlu0 %v274, 48
      %v1053 = vpop.permute.xlu0 %1052
      %1054 = vrot.lane.b32.xlu0 %v275, 48
      %v1055 = vpop.permute.xlu0 %1054
      %1056 = vrot.lane.b32.xlu0 %v277, 48
      %v1057 = vpop.permute.xlu0 %1056
      %1058 = vrot.lane.b32.xlu0 %v278, 48
      %v1059 = vpop.permute.xlu0 %1058
      %1092 = vrot.lane.b32.xlu0 %v341, 56
      %v1093 = vpop.permute.xlu0 %1092
      %1094 = vrot.lane.b32.xlu0 %v343, 56
      %v1095 = vpop.permute.xlu0 %1094
      %1096 = vrot.lane.b32.xlu0 %v346, 56
      %v1097 = vpop.permute.xlu0 %1096
      %1098 = vrot.lane.b32.xlu0 %v348, 56
      %v1099 = vpop.permute.xlu0 %1098
      %1100 = vrot.lane.b32.xlu0 %v351, 56
      %v1101 = vpop.permute.xlu0 %1100
      %1102 = vrot.lane.b32.xlu0 %v353, 56
      %v1103 = vpop.permute.xlu0 %1102
      %1104 = vrot.lane.b32.xlu0 %v356, 56
      %v1105 = vpop.permute.xlu0 %1104
      %1106 = vrot.lane.b32.xlu0 %v358, 56
      %v1107 = vpop.permute.xlu0 %1106
      %1108 = vrot.lane.b32.xlu0 %v361, 56
      %v1109 = vpop.permute.xlu0 %1108
      %1110 = vrot.lane.b32.xlu0 %v363, 56
      %v1111 = vpop.permute.xlu0 %1110
      %1112 = vrot.lane.b32.xlu0 %v366, 56
      %v1113 = vpop.permute.xlu0 %1112
      %1114 = vrot.lane.b32.xlu0 %v368, 56
      %v1115 = vpop.permute.xlu0 %1114
      %1116 = vrot.lane.b32.xlu0 %v371, 56
      %v1117 = vpop.permute.xlu0 %1116
      %1118 = vrot.lane.b32.xlu0 %v373, 56
      %v1119 = vpop.permute.xlu0 %1118
      %1120 = vrot.lane.b32.xlu0 %v376, 56
      %v1121 = vpop.permute.xlu0 %1120
      %1122 = vrot.lane.b32.xlu0 %v378, 56
      %v1123 = vpop.permute.xlu0 %1122
      %1124 = vrot.lane.b32.xlu0 %v381, 56
      %v1125 = vpop.permute.xlu0 %1124
      %1126 = vrot.lane.b32.xlu0 %v383, 56
      %v1127 = vpop.permute.xlu0 %1126
      %1128 = vrot.lane.b32.xlu0 %v386, 56
      %v1129 = vpop.permute.xlu0 %1128
      %1130 = vrot.lane.b32.xlu0 %v388, 56
      %v1131 = vpop.permute.xlu0 %1130
      %1132 = vrot.lane.b32.xlu0 %v391, 56
      %v1133 = vpop.permute.xlu0 %1132
      %1134 = vrot.lane.b32.xlu0 %v393, 56
      %v1135 = vpop.permute.xlu0 %1134
      %1136 = vrot.lane.b32.xlu0 %v396, 56
      %v1137 = vpop.permute.xlu0 %1136
      %1138 = vrot.lane.b32.xlu0 %v398, 56
      %v1139 = vpop.permute.xlu0 %1138
      %1140 = vrot.lane.b32.xlu0 %v401, 56
      %v1141 = vpop.permute.xlu0 %1140
      %1142 = vrot.lane.b32.xlu0 %v403, 56
      %v1143 = vpop.permute.xlu0 %1142
      %1144 = vrot.lane.b32.xlu0 %v406, 56
      %v1145 = vpop.permute.xlu0 %1144
      %1146 = vrot.lane.b32.xlu0 %v408, 56
      %v1147 = vpop.permute.xlu0 %1146
      %1148 = vrot.lane.b32.xlu0 %v495, 56
      %v1149 = vpop.permute.xlu0 %1148
      %1150 = vrot.lane.b32.xlu0 %v497, 56
      %v1151 = vpop.permute.xlu0 %1150
      %1152 = vrot.lane.b32.xlu0 %v508, 56
      %v1153 = vpop.permute.xlu0 %1152
      %1154 = vrot.lane.b32.xlu0 %v510, 56
      %v1155 = vpop.permute.xlu0 %1154
      %1188 = vrot.lane.b32.xlu0 %v422, 64
      %v1189 = vpop.permute.xlu0 %1188
      %1190 = vrot.lane.b32.xlu0 %v424, 64
      %v1191 = vpop.permute.xlu0 %1190
      %1192 = vrot.lane.b32.xlu0 %v427, 64
      %v1193 = vpop.permute.xlu0 %1192
      %1194 = vrot.lane.b32.xlu0 %v429, 64
      %v1195 = vpop.permute.xlu0 %1194
      %1196 = vrot.lane.b32.xlu0 %v432, 64
      %v1197 = vpop.permute.xlu0 %1196
      %1198 = vrot.lane.b32.xlu0 %v434, 64
      %v1199 = vpop.permute.xlu0 %1198
      %1200 = vrot.lane.b32.xlu0 %v437, 64
      %v1201 = vpop.permute.xlu0 %1200
      %1202 = vrot.lane.b32.xlu0 %v439, 64
      %v1203 = vpop.permute.xlu0 %1202
      %1204 = vrot.lane.b32.xlu0 %v442, 64
      %v1205 = vpop.permute.xlu0 %1204
      %1206 = vrot.lane.b32.xlu0 %v444, 64
      %v1207 = vpop.permute.xlu0 %1206
      %1208 = vrot.lane.b32.xlu0 %v447, 64
      %v1209 = vpop.permute.xlu0 %1208
      %1210 = vrot.lane.b32.xlu0 %v449, 64
      %v1211 = vpop.permute.xlu0 %1210
      %1212 = vrot.lane.b32.xlu0 %v452, 64
      %v1213 = vpop.permute.xlu0 %1212
      %1214 = vrot.lane.b32.xlu0 %v454, 64
      %v1215 = vpop.permute.xlu0 %1214
      %1216 = vrot.lane.b32.xlu0 %v457, 64
      %v1217 = vpop.permute.xlu0 %1216
      %1218 = vrot.lane.b32.xlu0 %v459, 64
      %v1219 = vpop.permute.xlu0 %1218
      %1220 = vrot.lane.b32.xlu0 %v462, 64
      %v1221 = vpop.permute.xlu0 %1220
      %1222 = vrot.lane.b32.xlu0 %v464, 64
      %v1223 = vpop.permute.xlu0 %1222
      %1224 = vrot.lane.b32.xlu0 %v467, 64
      %v1225 = vpop.permute.xlu0 %1224
      %1226 = vrot.lane.b32.xlu0 %v469, 64
      %v1227 = vpop.permute.xlu0 %1226
      %1228 = vrot.lane.b32.xlu0 %v472, 64
      %v1229 = vpop.permute.xlu0 %1228
      %1230 = vrot.lane.b32.xlu0 %v474, 64
      %v1231 = vpop.permute.xlu0 %1230
      %1232 = vrot.lane.b32.xlu0 %v477, 64
      %v1233 = vpop.permute.xlu0 %1232
      %1234 = vrot.lane.b32.xlu0 %v479, 64
      %v1235 = vpop.permute.xlu0 %1234
      %1236 = vrot.lane.b32.xlu0 %v482, 64
      %v1237 = vpop.permute.xlu0 %1236
      %1238 = vrot.lane.b32.xlu0 %v484, 64
      %v1239 = vpop.permute.xlu0 %1238
      %1240 = vrot.lane.b32.xlu0 %v487, 64
      %v1241 = vpop.permute.xlu0 %1240
      %1242 = vrot.lane.b32.xlu0 %v489, 64
      %v1243 = vpop.permute.xlu0 %1242
      %1244 = vrot.lane.b32.xlu0 %v500, 64
      %v1245 = vpop.permute.xlu0 %1244
      %1246 = vrot.lane.b32.xlu0 %v502, 64
      %v1247 = vpop.permute.xlu0 %1246
      %1248 = vrot.lane.b32.xlu0 %v513, 64
      %v1249 = vpop.permute.xlu0 %1248
      %1250 = vrot.lane.b32.xlu0 %v515, 64
      %v1251 = vpop.permute.xlu0 %1250
      %vm1284 = vcmask 64512
      %v1285 = vsel %vm1284, %v226, %v517
      %v1286 = vsel %vm1284, %v227, %v519
      %v1287 = vsel %vm1284, %v229, %v521
      %v1288 = vsel %vm1284, %v230, %v523
      %v1289 = vsel %vm1284, %v232, %v525
      %v1290 = vsel %vm1284, %v233, %v527
      %v1291 = vsel %vm1284, %v235, %v529
      %v1292 = vsel %vm1284, %v236, %v531
      %v1293 = vsel %vm1284, %v238, %v533
      %v1294 = vsel %vm1284, %v239, %v535
      %v1295 = vsel %vm1284, %v241, %v537
      %v1296 = vsel %vm1284, %v242, %v539
      %v1297 = vsel %vm1284, %v244, %v541
      %v1298 = vsel %vm1284, %v245, %v543
      %v1299 = vsel %vm1284, %v247, %v545
      %v1300 = vsel %vm1284, %v248, %v547
      %v1301 = vsel %vm1284, %v250, %v549
      %v1302 = vsel %vm1284, %v251, %v551
      %v1303 = vsel %vm1284, %v253, %v553
      %v1304 = vsel %vm1284, %v254, %v555
      %v1305 = vsel %vm1284, %v256, %v557
      %v1306 = vsel %vm1284, %v257, %v559
      %v1307 = vsel %vm1284, %v259, %v561
      %v1308 = vsel %vm1284, %v260, %v563
      %v1309 = vsel %vm1284, %v262, %v565
      %v1310 = vsel %vm1284, %v263, %v567
      %v1311 = vsel %vm1284, %v265, %v569
      %v1312 = vsel %vm1284, %v266, %v571
      %v1313 = vsel %vm1284, %v268, %v573
      %v1314 = vsel %vm1284, %v269, %v575
      %v1315 = vsel %vm1284, %v271, %v577
      %v1316 = vsel %vm1284, %v272, %v579
      %vm1317 = vcmask 130048
      %v1318 = vsel %vm1317, %v1285, %v613
      %v1319 = vsel %vm1317, %v1286, %v615
      %v1320 = vsel %vm1317, %v1287, %v617
      %v1321 = vsel %vm1317, %v1288, %v619
      %v1322 = vsel %vm1317, %v1289, %v621
      %v1323 = vsel %vm1317, %v1290, %v623
      %v1324 = vsel %vm1317, %v1291, %v625
      %v1325 = vsel %vm1317, %v1292, %v627
      %v1326 = vsel %vm1317, %v1293, %v629
      %v1327 = vsel %vm1317, %v1294, %v631
      %v1328 = vsel %vm1317, %v1295, %v633
      %v1329 = vsel %vm1317, %v1296, %v635
      %v1330 = vsel %vm1317, %v1297, %v637
      %v1331 = vsel %vm1317, %v1298, %v639
      %v1332 = vsel %vm1317, %v1299, %v641
      %v1333 = vsel %vm1317, %v1300, %v643
      %v1334 = vsel %vm1317, %v1301, %v645
      %v1335 = vsel %vm1317, %v1302, %v647
      %v1336 = vsel %vm1317, %v1303, %v649
      %v1337 = vsel %vm1317, %v1304, %v651
      %v1338 = vsel %vm1317, %v1305, %v653
      %v1339 = vsel %vm1317, %v1306, %v655
      %v1340 = vsel %vm1317, %v1307, %v657
      %v1341 = vsel %vm1317, %v1308, %v659
      %v1342 = vsel %vm1317, %v1309, %v661
      %v1343 = vsel %vm1317, %v1310, %v663
      %v1344 = vsel %vm1317, %v1311, %v665
      %v1345 = vsel %vm1317, %v1312, %v667
      %v1346 = vsel %vm1317, %v1313, %v669
      %v1347 = vsel %vm1317, %v1314, %v671
      %v1348 = vsel %vm1317, %v1315, %v673
      %v1349 = vsel %vm1317, %v1316, %v675
      %vm1350 = vcmask 195584
      %v1351 = vsel %vm1350, %v1318, %v709
      %v1352 = vsel %vm1350, %v1319, %v711
      %v1353 = vsel %vm1350, %v1320, %v713
      %v1354 = vsel %vm1350, %v1321, %v715
      %v1355 = vsel %vm1350, %v1322, %v717
      %v1356 = vsel %vm1350, %v1323, %v719
      %v1357 = vsel %vm1350, %v1324, %v721
      %v1358 = vsel %vm1350, %v1325, %v723
      %v1359 = vsel %vm1350, %v1326, %v725
      %v1360 = vsel %vm1350, %v1327, %v727
      %v1361 = vsel %vm1350, %v1328, %v729
      %v1362 = vsel %vm1350, %v1329, %v731
      %v1363 = vsel %vm1350, %v1330, %v733
      %v1364 = vsel %vm1350, %v1331, %v735
      %v1365 = vsel %vm1350, %v1332, %v737
      %v1366 = vsel %vm1350, %v1333, %v739
      %v1367 = vsel %vm1350, %v1334, %v741
      %v1368 = vsel %vm1350, %v1335, %v743
      %v1369 = vsel %vm1350, %v1336, %v745
      %v1370 = vsel %vm1350, %v1337, %v747
      %v1371 = vsel %vm1350, %v1338, %v749
      %v1372 = vsel %vm1350, %v1339, %v751
      %v1373 = vsel %vm1350, %v1340, %v753
      %v1374 = vsel %vm1350, %v1341, %v755
      %v1375 = vsel %vm1350, %v1342, %v757
      %v1376 = vsel %vm1350, %v1343, %v759
      %v1377 = vsel %vm1350, %v1344, %v761
      %v1378 = vsel %vm1350, %v1345, %v763
      %v1379 = vsel %vm1350, %v1346, %v765
      %v1380 = vsel %vm1350, %v1347, %v767
      %v1381 = vsel %vm1350, %v1348, %v769
      %v1382 = vsel %vm1350, %v1349, %v771
      %vm1383 = vcmask 261120
      %v1384 = vsel %vm1383, %v1351, %v805
      %v1385 = vsel %vm1383, %v1352, %v807
      %v1386 = vsel %vm1383, %v1353, %v809
      %v1387 = vsel %vm1383, %v1354, %v811
      %v1388 = vsel %vm1383, %v1355, %v813
      %v1389 = vsel %vm1383, %v1356, %v815
      %v1390 = vsel %vm1383, %v1357, %v817
      %v1391 = vsel %vm1383, %v1358, %v819
      %v1392 = vsel %vm1383, %v1359, %v821
      %v1393 = vsel %vm1383, %v1360, %v823
      %v1394 = vsel %vm1383, %v1361, %v825
      %v1395 = vsel %vm1383, %v1362, %v827
      %v1396 = vsel %vm1383, %v1363, %v829
      %v1397 = vsel %vm1383, %v1364, %v831
      %v1398 = vsel %vm1383, %v1365, %v833
      %v1399 = vsel %vm1383, %v1366, %v835
      %v1400 = vsel %vm1383, %v1367, %v837
      %v1401 = vsel %vm1383, %v1368, %v839
      %v1402 = vsel %vm1383, %v1369, %v841
      %v1403 = vsel %vm1383, %v1370, %v843
      %v1404 = vsel %vm1383, %v1371, %v845
      %v1405 = vsel %vm1383, %v1372, %v847
      %v1406 = vsel %vm1383, %v1373, %v849
      %v1407 = vsel %vm1383, %v1374, %v851
      %v1408 = vsel %vm1383, %v1375, %v853
      %v1409 = vsel %vm1383, %v1376, %v855
      %v1410 = vsel %vm1383, %v1377, %v857
      %v1411 = vsel %vm1383, %v1378, %v859
      %v1412 = vsel %vm1383, %v1379, %v861
      %v1413 = vsel %vm1383, %v1380, %v863
      %v1414 = vsel %vm1383, %v1381, %v865
      %v1415 = vsel %vm1383, %v1382, %v867
      %vm1416 = vcmask 326656
      %v1417 = vsel %vm1416, %v1384, %v901
      %v1418 = vsel %vm1416, %v1385, %v903
      %v1419 = vsel %vm1416, %v1386, %v905
      %v1420 = vsel %vm1416, %v1387, %v907
      %v1421 = vsel %vm1416, %v1388, %v909
      %v1422 = vsel %vm1416, %v1389, %v911
      %v1423 = vsel %vm1416, %v1390, %v913
      %v1424 = vsel %vm1416, %v1391, %v915
      %v1425 = vsel %vm1416, %v1392, %v917
      %v1426 = vsel %vm1416, %v1393, %v919
      %v1427 = vsel %vm1416, %v1394, %v921
      %v1428 = vsel %vm1416, %v1395, %v923
      %v1429 = vsel %vm1416, %v1396, %v925
      %v1430 = vsel %vm1416, %v1397, %v927
      %v1431 = vsel %vm1416, %v1398, %v929
      %v1432 = vsel %vm1416, %v1399, %v931
      %v1433 = vsel %vm1416, %v1400, %v933
      %v1434 = vsel %vm1416, %v1401, %v935
      %v1435 = vsel %vm1416, %v1402, %v937
      %v1436 = vsel %vm1416, %v1403, %v939
      %v1437 = vsel %vm1416, %v1404, %v941
      %v1438 = vsel %vm1416, %v1405, %v943
      %v1439 = vsel %vm1416, %v1406, %v945
      %v1440 = vsel %vm1416, %v1407, %v947
      %v1441 = vsel %vm1416, %v1408, %v949
      %v1442 = vsel %vm1416, %v1409, %v951
      %v1443 = vsel %vm1416, %v1410, %v953
      %v1444 = vsel %vm1416, %v1411, %v955
      %v1445 = vsel %vm1416, %v1412, %v957
      %v1446 = vsel %vm1416, %v1413, %v959
      %v1447 = vsel %vm1416, %v1414, %v961
      %v1448 = vsel %vm1416, %v1415, %v963
      %vm1449 = vcmask 392192
      %v1450 = vsel %vm1449, %v1417, %v997
      %v1451 = vsel %vm1449, %v1418, %v999
      %v1452 = vsel %vm1449, %v1419, %v1001
      %v1453 = vsel %vm1449, %v1420, %v1003
      %v1454 = vsel %vm1449, %v1421, %v1005
      %v1455 = vsel %vm1449, %v1422, %v1007
      %v1456 = vsel %vm1449, %v1423, %v1009
      %v1457 = vsel %vm1449, %v1424, %v1011
      %v1458 = vsel %vm1449, %v1425, %v1013
      %v1459 = vsel %vm1449, %v1426, %v1015
      %v1460 = vsel %vm1449, %v1427, %v1017
      %v1461 = vsel %vm1449, %v1428, %v1019
      %v1462 = vsel %vm1449, %v1429, %v1021
      %v1463 = vsel %vm1449, %v1430, %v1023
      %v1464 = vsel %vm1449, %v1431, %v1025
      %v1465 = vsel %vm1449, %v1432, %v1027
      %v1466 = vsel %vm1449, %v1433, %v1029
      %v1467 = vsel %vm1449, %v1434, %v1031
      %v1468 = vsel %vm1449, %v1435, %v1033
      %v1469 = vsel %vm1449, %v1436, %v1035
      %v1470 = vsel %vm1449, %v1437, %v1037
      %v1471 = vsel %vm1449, %v1438, %v1039
      %v1472 = vsel %vm1449, %v1439, %v1041
      %v1473 = vsel %vm1449, %v1440, %v1043
      %v1474 = vsel %vm1449, %v1441, %v1045
      %v1475 = vsel %vm1449, %v1442, %v1047
      %v1476 = vsel %vm1449, %v1443, %v1049
      %v1477 = vsel %vm1449, %v1444, %v1051
      %v1478 = vsel %vm1449, %v1445, %v1053
      %v1479 = vsel %vm1449, %v1446, %v1055
      %v1480 = vsel %vm1449, %v1447, %v1057
      %v1481 = vsel %vm1449, %v1448, %v1059
      %vm1482 = vcmask 457728
      %v1483 = vsel %vm1482, %v1450, %v1093
      %v1484 = vsel %vm1482, %v1451, %v1095
      %v1485 = vsel %vm1482, %v1452, %v1097
      %v1486 = vsel %vm1482, %v1453, %v1099
      %v1487 = vsel %vm1482, %v1454, %v1101
      %v1488 = vsel %vm1482, %v1455, %v1103
      %v1489 = vsel %vm1482, %v1456, %v1105
      %v1490 = vsel %vm1482, %v1457, %v1107
      %v1491 = vsel %vm1482, %v1458, %v1109
      %v1492 = vsel %vm1482, %v1459, %v1111
      %v1493 = vsel %vm1482, %v1460, %v1113
      %v1494 = vsel %vm1482, %v1461, %v1115
      %v1495 = vsel %vm1482, %v1462, %v1117
      %v1496 = vsel %vm1482, %v1463, %v1119
      %v1497 = vsel %vm1482, %v1464, %v1121
      %v1498 = vsel %vm1482, %v1465, %v1123
      %v1499 = vsel %vm1482, %v1466, %v1125
      %v1500 = vsel %vm1482, %v1467, %v1127
      %v1501 = vsel %vm1482, %v1468, %v1129
      %v1502 = vsel %vm1482, %v1469, %v1131
      %v1503 = vsel %vm1482, %v1470, %v1133
      %v1504 = vsel %vm1482, %v1471, %v1135
      %v1505 = vsel %vm1482, %v1472, %v1137
      %v1506 = vsel %vm1482, %v1473, %v1139
      %v1507 = vsel %vm1482, %v1474, %v1141
      %v1508 = vsel %vm1482, %v1475, %v1143
      %v1509 = vsel %vm1482, %v1476, %v1145
      %v1510 = vsel %vm1482, %v1477, %v1147
      %v1511 = vsel %vm1482, %v1478, %v1149
      %v1512 = vsel %vm1482, %v1479, %v1151
      %v1513 = vsel %vm1482, %v1480, %v1153
      %v1514 = vsel %vm1482, %v1481, %v1155
      %vm1515 = vcmask 523264
      %v1516 = vsel %vm1515, %v1483, %v1189
      %v1517 = vsel %vm1515, %v1484, %v1191
      %v1518 = vsel %vm1515, %v1485, %v1193
      %v1519 = vsel %vm1515, %v1486, %v1195
      %v1520 = vsel %vm1515, %v1487, %v1197
      %v1521 = vsel %vm1515, %v1488, %v1199
      %v1522 = vsel %vm1515, %v1489, %v1201
      %v1523 = vsel %vm1515, %v1490, %v1203
      %v1524 = vsel %vm1515, %v1491, %v1205
      %v1525 = vsel %vm1515, %v1492, %v1207
      %v1526 = vsel %vm1515, %v1493, %v1209
      %v1527 = vsel %vm1515, %v1494, %v1211
      %v1528 = vsel %vm1515, %v1495, %v1213
      %v1529 = vsel %vm1515, %v1496, %v1215
      %v1530 = vsel %vm1515, %v1497, %v1217
      %v1531 = vsel %vm1515, %v1498, %v1219
      %v1532 = vsel %vm1515, %v1499, %v1221
      %v1533 = vsel %vm1515, %v1500, %v1223
      %v1534 = vsel %vm1515, %v1501, %v1225
      %v1535 = vsel %vm1515, %v1502, %v1227
      %v1536 = vsel %vm1515, %v1503, %v1229
      %v1537 = vsel %vm1515, %v1504, %v1231
      %v1538 = vsel %vm1515, %v1505, %v1233
      %v1539 = vsel %vm1515, %v1506, %v1235
      %v1540 = vsel %vm1515, %v1507, %v1237
      %v1541 = vsel %vm1515, %v1508, %v1239
      %v1542 = vsel %vm1515, %v1509, %v1241
      %v1543 = vsel %vm1515, %v1510, %v1243
      %v1544 = vsel %vm1515, %v1511, %v1245
      %v1545 = vsel %vm1515, %v1512, %v1247
      %v1546 = vsel %vm1515, %v1513, %v1249
      %v1547 = vsel %vm1515, %v1514, %v1251
      %v1548 = vpack.c.bf16 %v1517, %v1516
      %v1549 = vpack.c.bf16 %v1519, %v1518
      %v1550 = vpack.c.bf16 %v1521, %v1520
      %v1551 = vpack.c.bf16 %v1523, %v1522
      %v1552 = vpack.c.bf16 %v1525, %v1524
      %v1553 = vpack.c.bf16 %v1527, %v1526
      %v1554 = vpack.c.bf16 %v1529, %v1528
      %v1555 = vpack.c.bf16 %v1531, %v1530
      %v1556 = vpack.c.bf16 %v1533, %v1532
      %v1557 = vpack.c.bf16 %v1535, %v1534
      %v1558 = vpack.c.bf16 %v1537, %v1536
      %v1559 = vpack.c.bf16 %v1539, %v1538
      %v1560 = vpack.c.bf16 %v1541, %v1540
      %v1561 = vpack.c.bf16 %v1543, %v1542
      %v1562 = vpack.c.bf16 %v1545, %v1544
      %v1563 = vpack.c.bf16 %v1547, %v1546
      %v1564 = vld [vmem:[%s1] sm:$0xf]
      %v1565 = vld [vmem:[%s1 + $0x4] sm:$0xf]
      %v1566 = vld [vmem:[%s1 + $0x8] sm:$0xf]
      %v1567 = vld [vmem:[%s1 + $0xc] sm:$0xf]
      %v1568 = vld [vmem:[%s1 + $0x10] sm:$0xf]
      %v1569 = vld [vmem:[%s1 + $0x14] sm:$0xf]
      %v1570 = vld [vmem:[%s1 + $0x18] sm:$0xf]
      %v1571 = vld [vmem:[%s1 + $0x1c] sm:$0xf]
      %v1572 = vld [vmem:[%s1 + $0x20] sm:$0xf]
      %v1573 = vld [vmem:[%s2] sm:$0x1]
      %v1575 = vlaneseq
      %v1576 = vshrl.u32 %v1575, 7
      %v1577 = vsub.s32 0, %v1576
      %v1578 = vrot.slane %v1573, %v1577
      %v1589 = vunpack.c.l.b16 %v1564
      %v1590 = vunpack.c.l.b16 %v1565
      %v1591 = vunpack.c.l.b16 %v1566
      %v1592 = vunpack.c.l.b16 %v1567
      %v1593 = vunpack.c.l.b16 %v1568
      %v1594 = vunpack.c.l.b16 %v1569
      %v1595 = vunpack.c.l.b16 %v1570
      %v1596 = vunpack.c.l.b16 %v1571
      %v1597 = vunpack.c.l.b16 %v1572
      %v1598 = vpack.c.b16 %v1590, %v1589
      %v1599 = vpack.c.b16 %v1592, %v1591
      %v1600 = vpack.c.b16 %v1594, %v1593
      %v1601 = vpack.c.b16 %v1596, %v1595
      %v1602 = vpack.c.b16 %v1597, %v1597
      %vm1607 = vcmask 588800
      %v1609 = vsel %vm1607, %v1548, 0
      %v1612 = vsel %vm1607, %v1549, 0
      %v1615 = vsel %vm1607, %v1550, 0
      %v1618 = vsel %vm1607, %v1551, 0
      %v1621 = vsel %vm1607, %v1552, 0
      %v1624 = vsel %vm1607, %v1553, 0
      %v1627 = vsel %vm1607, %v1554, 0
      %v1630 = vsel %vm1607, %v1555, 0
      %v1633 = vsel %vm1607, %v1556, 0
      %v1636 = vsel %vm1607, %v1557, 0
      %v1639 = vsel %vm1607, %v1558, 0
      %v1642 = vsel %vm1607, %v1559, 0
      %v1645 = vsel %vm1607, %v1560, 0
      %v1648 = vsel %vm1607, %v1561, 0
      %v1651 = vsel %vm1607, %v1562, 0
      %v1654 = vsel %vm1607, %v1563, 0
      %vm1656 = vcmask 1043456
      %v1658 = vsel %vm1656, %v1602, 0
      %1660 = vmatprep.subr.bf16.mxu0 0
      %1661 = vmatpush1.bf16.msra.mxu0 0
      %1662 = vmatprep.subr.bf16.mxu0 0
      %1663 = vmatpush1.bf16.msra.mxu0 0
      %1664 = vmatprep.subr.bf16.mxu0 0
      %1665 = vmatpush1.bf16.msra.mxu0 0
      %1666 = vmatprep.subr.bf16.mxu0 0
      %1667 = vmatpush1.bf16.msra.mxu0 %v1658
      %1668 = vmatprep.subr.bf16.mxu0 0
      %1669 = vmatpush1.bf16.msra.mxu0 %v1601
      %1670 = vmatprep.subr.bf16.mxu0 0
      %1671 = vmatpush1.bf16.msra.mxu0 %v1600
      %1672 = vmatprep.subr.bf16.mxu0 0
      %1673 = vmatpush1.bf16.msra.mxu0 %v1599
      %1674 = vmatprep.subr.bf16.mxu0 0
      %1675 = vmatpush1.bf16.msra.mxu0 %v1598
      %1676 = vmatprep.subr.bf16.mxu0 0
      %1677 = vmatpush2.bf16.msra.mxu0 0
      %1678 = vmatprep.subr.bf16.mxu0 0
      %1679 = vmatpush2.bf16.msra.mxu0 0
      %1680 = vmatprep.subr.bf16.mxu0 0
      %1681 = vmatpush2.bf16.msra.mxu0 0
      %1682 = vmatprep.subr.bf16.mxu0 0
      %1683 = vmatpush2.bf16.msra.mxu0 0
      %1684 = vmatprep.subr.bf16.mxu0 0
      %1685 = vmatpush2.bf16.msra.mxu0 0
      %1686 = vmatprep.subr.bf16.mxu0 0
      %1687 = vmatpush2.bf16.msra.mxu0 0
      %1688 = vmatprep.subr.bf16.mxu0 0
      %1689 = vmatpush2.bf16.msra.mxu0 0
      %1690 = vmatprep.subr.bf16.mxu0 0
      %1691 = vmatpush2.bf16.msra.mxu0 0
      %1692 = vmatprep.mubr.bf16.mxu0 0
      %1693 = vmatmul.mubr.bf16.gmra.mxu0 %v1609
      %v1694 = vpop.f32.mrf.mxu0
      %v1695 = vadd.f32 %v1578, %v1694
      %v1696 = vpop.f32.mrf.mxu0
      %v1697 = vpop.f32.mrf.mxu0
      %v1698 = vadd.f32 %v1578, %v1697
      %v1699 = vpop.f32.mrf.mxu0
      %1700 = vmatprep.mubr.bf16.mxu0 0
      %1701 = vmatmul.mubr.bf16.gmra.mxu0 %v1612
      %v1702 = vpop.f32.mrf.mxu0
      %v1703 = vadd.f32 %v1578, %v1702
      %v1704 = vpop.f32.mrf.mxu0
      %v1705 = vpop.f32.mrf.mxu0
      %v1706 = vadd.f32 %v1578, %v1705
      %v1707 = vpop.f32.mrf.mxu0
      %1708 = vmatprep.mubr.bf16.mxu0 0
      %1709 = vmatmul.mubr.bf16.gmra.mxu0 %v1615
      %v1710 = vpop.f32.mrf.mxu0
      %v1711 = vadd.f32 %v1578, %v1710
      %v1712 = vpop.f32.mrf.mxu0
      %v1713 = vpop.f32.mrf.mxu0
      %v1714 = vadd.f32 %v1578, %v1713
      %v1715 = vpop.f32.mrf.mxu0
      %1716 = vmatprep.mubr.bf16.mxu0 0
      %1717 = vmatmul.mubr.bf16.gmra.mxu0 %v1618
      %v1718 = vpop.f32.mrf.mxu0
      %v1719 = vadd.f32 %v1578, %v1718
      %v1720 = vpop.f32.mrf.mxu0
      %v1721 = vpop.f32.mrf.mxu0
      %v1722 = vadd.f32 %v1578, %v1721
      %v1723 = vpop.f32.mrf.mxu0
      %1724 = vmatprep.mubr.bf16.mxu0 0
      %1725 = vmatmul.mubr.bf16.gmra.mxu0 %v1621
      %v1726 = vpop.f32.mrf.mxu0
      %v1727 = vadd.f32 %v1578, %v1726
      %v1728 = vpop.f32.mrf.mxu0
      %v1729 = vpop.f32.mrf.mxu0
      %v1730 = vadd.f32 %v1578, %v1729
      %v1731 = vpop.f32.mrf.mxu0
      %1732 = vmatprep.mubr.bf16.mxu0 0
      %1733 = vmatmul.mubr.bf16.gmra.mxu0 %v1624
      %v1734 = vpop.f32.mrf.mxu0
      %v1735 = vadd.f32 %v1578, %v1734
      %v1736 = vpop.f32.mrf.mxu0
      %v1737 = vpop.f32.mrf.mxu0
      %v1738 = vadd.f32 %v1578, %v1737
      %v1739 = vpop.f32.mrf.mxu0
      %1740 = vmatprep.mubr.bf16.mxu0 0
      %1741 = vmatmul.mubr.bf16.gmra.mxu0 %v1627
      %v1742 = vpop.f32.mrf.mxu0
      %v1743 = vadd.f32 %v1578, %v1742
      %v1744 = vpop.f32.mrf.mxu0
      %v1745 = vpop.f32.mrf.mxu0
      %v1746 = vadd.f32 %v1578, %v1745
      %v1747 = vpop.f32.mrf.mxu0
      %1748 = vmatprep.mubr.bf16.mxu0 0
      %1749 = vmatmul.mubr.bf16.gmra.mxu0 %v1630
      %v1750 = vpop.f32.mrf.mxu0
      %v1751 = vadd.f32 %v1578, %v1750
      %v1752 = vpop.f32.mrf.mxu0
      %v1753 = vpop.f32.mrf.mxu0
      %v1754 = vadd.f32 %v1578, %v1753
      %v1755 = vpop.f32.mrf.mxu0
      %1756 = vmatprep.mubr.bf16.mxu0 0
      %1757 = vmatmul.mubr.bf16.gmra.mxu0 %v1633
      %v1758 = vpop.f32.mrf.mxu0
      %v1759 = vadd.f32 %v1578, %v1758
      %v1760 = vpop.f32.mrf.mxu0
      %v1761 = vpop.f32.mrf.mxu0
      %v1762 = vadd.f32 %v1578, %v1761
      %v1763 = vpop.f32.mrf.mxu0
      %1764 = vmatprep.mubr.bf16.mxu0 0
      %1765 = vmatmul.mubr.bf16.gmra.mxu0 %v1636
      %v1766 = vpop.f32.mrf.mxu0
      %v1767 = vadd.f32 %v1578, %v1766
      %v1768 = vpop.f32.mrf.mxu0
      %v1769 = vpop.f32.mrf.mxu0
      %v1770 = vadd.f32 %v1578, %v1769
      %v1771 = vpop.f32.mrf.mxu0
      %1772 = vmatprep.mubr.bf16.mxu0 0
      %1773 = vmatmul.mubr.bf16.gmra.mxu0 %v1639
      %v1774 = vpop.f32.mrf.mxu0
      %v1775 = vadd.f32 %v1578, %v1774
      %v1776 = vpop.f32.mrf.mxu0
      %v1777 = vpop.f32.mrf.mxu0
      %v1778 = vadd.f32 %v1578, %v1777
      %v1779 = vpop.f32.mrf.mxu0
      %1780 = vmatprep.mubr.bf16.mxu0 0
      %1781 = vmatmul.mubr.bf16.gmra.mxu0 %v1642
      %v1782 = vpop.f32.mrf.mxu0
      %v1783 = vadd.f32 %v1578, %v1782
      %v1784 = vpop.f32.mrf.mxu0
      %v1785 = vpop.f32.mrf.mxu0
      %v1786 = vadd.f32 %v1578, %v1785
      %v1787 = vpop.f32.mrf.mxu0
      %1788 = vmatprep.mubr.bf16.mxu0 0
      %1789 = vmatmul.mubr.bf16.gmra.mxu0 %v1645
      %v1790 = vpop.f32.mrf.mxu0
      %v1791 = vadd.f32 %v1578, %v1790
      %v1792 = vpop.f32.mrf.mxu0
      %v1793 = vpop.f32.mrf.mxu0
      %v1794 = vadd.f32 %v1578, %v1793
      %v1795 = vpop.f32.mrf.mxu0
      %1796 = vmatprep.mubr.bf16.mxu0 0
      %1797 = vmatmul.mubr.bf16.gmra.mxu0 %v1648
      %v1798 = vpop.f32.mrf.mxu0
      %v1799 = vadd.f32 %v1578, %v1798
      %v1800 = vpop.f32.mrf.mxu0
      %v1801 = vpop.f32.mrf.mxu0
      %v1802 = vadd.f32 %v1578, %v1801
      %v1803 = vpop.f32.mrf.mxu0
      %1804 = vmatprep.mubr.bf16.mxu0 0
      %1805 = vmatmul.mubr.bf16.gmra.mxu0 %v1651
      %v1806 = vpop.f32.mrf.mxu0
      %v1807 = vadd.f32 %v1578, %v1806
      %v1808 = vpop.f32.mrf.mxu0
      %v1809 = vpop.f32.mrf.mxu0
      %v1810 = vadd.f32 %v1578, %v1809
      %v1811 = vpop.f32.mrf.mxu0
      %1812 = vmatprep.mubr.bf16.mxu0 0
      %1813 = vmatmul.mubr.bf16.gmra.mxu0 %v1654
      %v1814 = vpop.f32.mrf.mxu0
      %v1815 = vadd.f32 %v1578, %v1814
      %v1816 = vpop.f32.mrf.mxu0
      %v1817 = vpop.f32.mrf.mxu0
      %v1818 = vadd.f32 %v1578, %v1817
      %v1819 = vpop.f32.mrf.mxu0
      %1820 = vdwg.mxu0
      %1821 = vst [vmem:[%s170] sm:$0xff] %v1695
      %1822 = vst [vmem:[%s170 + $0x8] sm:$0xff] %v1698
      %1823 = vst [vmem:[%s170 + $0x10] sm:$0xff] %v1703
      %1824 = vst [vmem:[%s170 + $0x18] sm:$0xff] %v1706
      %1825 = vst [vmem:[%s170 + $0x20] sm:$0xff] %v1711
      %1826 = vst [vmem:[%s170 + $0x28] sm:$0xff] %v1714
      %1827 = vst [vmem:[%s170 + $0x30] sm:$0xff] %v1719
      %1828 = vst [vmem:[%s170 + $0x38] sm:$0xff] %v1722
      %1829 = vst [vmem:[%s170 + $0x40] sm:$0xff] %v1727
      %1830 = vst [vmem:[%s170 + $0x48] sm:$0xff] %v1730
      %1831 = vst [vmem:[%s170 + $0x50] sm:$0xff] %v1735
      %1832 = vst [vmem:[%s170 + $0x58] sm:$0xff] %v1738
      %1833 = vst [vmem:[%s170 + $0x60] sm:$0xff] %v1743
      %1834 = vst [vmem:[%s170 + $0x68] sm:$0xff] %v1746
      %1835 = vst [vmem:[%s170 + $0x70] sm:$0xff] %v1751
      %1836 = vst [vmem:[%s170 + $0x78] sm:$0xff] %v1754
      %1837 = vst [vmem:[%s170 + $0x80] sm:$0xff] %v1759
      %1838 = vst [vmem:[%s170 + $0x88] sm:$0xff] %v1762
      %1839 = vst [vmem:[%s170 + $0x90] sm:$0xff] %v1767
      %1840 = vst [vmem:[%s170 + $0x98] sm:$0xff] %v1770
      %1841 = vst [vmem:[%s170 + $0xa0] sm:$0xff] %v1775
      %1842 = vst [vmem:[%s170 + $0xa8] sm:$0xff] %v1778
      %1843 = vst [vmem:[%s170 + $0xb0] sm:$0xff] %v1783
      %1844 = vst [vmem:[%s170 + $0xb8] sm:$0xff] %v1786
      %1845 = vst [vmem:[%s170 + $0xc0] sm:$0xff] %v1791
      %1846 = vst [vmem:[%s170 + $0xc8] sm:$0xff] %v1794
      %1847 = vst [vmem:[%s170 + $0xd0] sm:$0xff] %v1799
      %1848 = vst [vmem:[%s170 + $0xd8] sm:$0xff] %v1802
      %1849 = vst [vmem:[%s170 + $0xe0] sm:$0xff] %v1807
      %1850 = vst [vmem:[%s170 + $0xe8] sm:$0xff] %v1810
      %1851 = vst [vmem:[%s170 + $0xf0] sm:$0xff] %v1815
      %1852 = vst [vmem:[%s170 + $0xf8] sm:$0xff] %v1818
      %p1853 = scmp.lt.s32.totalorder %s14, 1
      %s1854 = scalar_select %p1853, %s14, 1
      %s1855 = smul.addr %s1854, 32
      %s1856 = smul.addr %s1855, 8
      %s1857 = scalar_lea.vmem %s3, %s1856
      // Predicated region
      $region33: #{_m2det_level_forward.1} parent=31 // pred_check
        %p1858 = pneg %p100
      $region34: #{_m2det_level_forward.1} parent=31 // pred_check_branch
        %1860 = sbr.rel (%p1858) target = $region36
      $region35: #{_m2det_level_forward.1} parent=31 // pred_region
        _
      $region36: #{_m2det_level_forward.1} parent=31 // pred_fallthru
        _
    $region32: #{_m2det_level_forward.1} parent=5 // pred_fallthru
      _
    %p1861 = scmp.le.s32.totalorder 2, %s9
    // Predicated region
    $region37: #{_m2det_level_forward.1} parent=5 // pred_check
      %p1862 = pneg %p1861
    $region38: #{_m2det_level_forward.1} parent=5 // pred_check_branch
      %1864 = sbr.rel (%p1862) target = $region40
    $region39: #{_m2det_level_forward.1} parent=5 // pred_region
      %s1865 = ssub.s32 %s9, 2
      // Predicated region
      $region41: #{_m2det_level_forward.1} parent=39 // pred_check
        %p1866 = pneg %p106
      $region42: #{_m2det_level_forward.1} parent=39 // pred_check_branch
        %1868 = sbr.rel (%p1866) target = $region44
      $region43: #{_m2det_level_forward.1} parent=39 // pred_region
        %p1869 = scmp.lt.s32.totalorder %s15, 1
        %s1870 = scalar_select %p1869, %s15, 1
        %s1871 = smul.addr %s1870, 32
        %s1872 = smul.addr %s1871, 8
        %s1873 = scalar_lea.vmem %s3, %s1872
      $region44: #{_m2det_level_forward.1} parent=39 // pred_fallthru
        _
    $region40: #{_m2det_level_forward.1} parent=5 // pred_fallthru
      _
  $region6: #{_m2det_level_forward.1} parent=0 // loop_footer
    %s13 = sadd.s32 1, %s9
  $region7: #{_m2det_level_forward.1} parent=0 // loop_footer_branch
    %8 = sbr.rel target = $region3
  $region8: #{_m2det_level_forward.1} parent=0 // loop_exit
    _

</llo_original>
